<compile_context>
chip_gen: v7x
topology: tpu7x:2x2x1
jax: 0.10.0
libtpu: 0.0.40
codegen_flags: <defaults>
</compile_context>

<pallas_src>
import jax
import jax.numpy as jnp
from jax.experimental import pallas as pl
from jax.experimental.pallas import tpu as pltpu

HIDDEN_SIZE = 128     # lane-aligned small stand-in for the module's hidden_size=256
LATENT_SIZE = 32      # latent_size in the reference
COND_SIZE = 8         # cond_size in the reference
OUTPUT_SIZE = 28      # vocab size (26 letters + SOS/EOS)
N_TENSES = 4
V_PAD = 128           # logits lane dim padded to 128 (sliced back to 28 on host)
ZC_PAD = 128          # [z, cond] row padded to 128 lanes (zeros beyond 40)


def _round_up(n, m):
    return ((n + m - 1) // m) * m


# ---------------------------------------------------------------------------
# Fused whole-sequence decoder kernel (single grid step).
#   init   : h0 = [z, cond] @ W_l2h + b_l2h (first=True)  or  h0/c0 from input
#   each t : x      = relu(embedding[tok_t])
#            gates  = [x, h] @ [W_ih; W_hh] + (b_ih + b_hh)   gate order i,f,g,o
#            c      = sigmoid(f)*c + sigmoid(i)*tanh(g)
#            h      = sigmoid(o)*tanh(c)         (h stored into (T_pad,H) buffer)
#   final  : logits[0:T_pad] = h_buf @ W_out + b_out   (one batched matmul)
# `first` and T are static (trace-time) constants.
# ---------------------------------------------------------------------------
def _make_decode_kernel(first: bool, T: int):
    H = HIDDEN_SIZE

    def kernel(tok_ref,                                    # SMEM (T,) int32, scalar-prefetched
               zc_ref, h0_ref, c0_ref,                     # (1,ZC_PAD) f32, (1,H) f32, (1,H) f32
               emb_ref,                                    # (V, H) f32
               wf_ref, bf_ref,                             # (2H,4H) bf16, (1,4H) f32
               wout_ref, bout_ref,                         # (H,V_PAD) bf16, (1,V_PAD) f32
               wl2h_ref, bl2h_ref,                         # (ZC_PAD,H) bf16, (1,H) f32
               logits_ref, hout_ref, cout_ref,             # outputs
               hbuf_sc):                                   # VMEM (T_pad, H) f32 scratch
        # ---- initial hidden state (vreg-carried from here on) ----
        if first:
            h = (jnp.dot(zc_ref[...].astype(jnp.bfloat16), wl2h_ref[...],
                         preferred_element_type=jnp.float32)
                 + bl2h_ref[...])
            c = jnp.zeros((1, H), jnp.float32)
        else:
            h = h0_ref[...]
            c = c0_ref[...]

        # zero the padded tail rows once so the batched output matmul is
        # deterministic (padded logit rows are sliced away on the host)
        hbuf_sc[...] = jnp.zeros_like(hbuf_sc)

        wf = wf_ref[...]
        bias = bf_ref[...]

        # Fully-unrolled recurrence; only the true h/c dependence serializes.
        for t in range(T):
            # embedding lookup (clamped: VMEM reads have no bounds check) + relu
            tok = jnp.clip(tok_ref[t], 0, OUTPUT_SIZE - 1)
            x = jnp.maximum(emb_ref[pl.ds(tok, 1), :], 0.0)            # (1, H)

            # single fused matmul for both LSTM input and hidden projections
            xh = jnp.concatenate([x, h], axis=1).astype(jnp.bfloat16)  # (1, 2H)
            gates = (jnp.dot(xh, wf, preferred_element_type=jnp.float32)
                     + bias)                                           # (1, 4H)

            # slice first (128-lane-aligned), then 3H sigmoid + H tanh on EUP
            i_g = jax.nn.sigmoid(gates[:, 0:H])
            f_g = jax.nn.sigmoid(gates[:, H:2 * H])
            g_g = jnp.tanh(gates[:, 2 * H:3 * H])
            o_g = jax.nn.sigmoid(gates[:, 3 * H:4 * H])

            c = f_g * c + i_g * g_g
            h = o_g * jnp.tanh(c)
            hbuf_sc[pl.ds(t, 1), :] = h                                # static row index

        # Batched output projection: one (T_pad,H)@(H,V_PAD) MXU call,
        # one dense (T_pad,128) store.
        logits_ref[...] = (
            jnp.dot(hbuf_sc[...].astype(jnp.bfloat16), wout_ref[...],
                    preferred_element_type=jnp.float32)
            + bout_ref[...])

        # final recurrent state, written once
        hout_ref[...] = h
        cout_ref[...] = c

    return kernel


def _grid_spec(T_pad):
    const = lambda i, toks: (0, 0)  # everything resident in VMEM, single grid step
    return pltpu.PrefetchScalarGridSpec(
        num_scalar_prefetch=1,                             # tokens -> SMEM
        grid=(1,),
        in_specs=[
            pl.BlockSpec((1, ZC_PAD), const),                          # zc
            pl.BlockSpec((1, HIDDEN_SIZE), const),                     # h0_in
            pl.BlockSpec((1, HIDDEN_SIZE), const),                     # c0_in
            pl.BlockSpec((OUTPUT_SIZE, HIDDEN_SIZE), const),           # embedding
            pl.BlockSpec((2 * HIDDEN_SIZE, 4 * HIDDEN_SIZE), const),   # w_fused
            pl.BlockSpec((1, 4 * HIDDEN_SIZE), const),                 # b_fused
            pl.BlockSpec((HIDDEN_SIZE, V_PAD), const),                 # w_out
            pl.BlockSpec((1, V_PAD), const),                           # b_out
            pl.BlockSpec((ZC_PAD, HIDDEN_SIZE), const),                # w_l2h
            pl.BlockSpec((1, HIDDEN_SIZE), const),                     # b_l2h
        ],
        out_specs=(
            pl.BlockSpec((T_pad, V_PAD), const),                       # all logits at once
            pl.BlockSpec((1, HIDDEN_SIZE), const),                     # final h
            pl.BlockSpec((1, HIDDEN_SIZE), const),                     # final c
        ),
        scratch_shapes=[
            pltpu.VMEM((T_pad, HIDDEN_SIZE), jnp.float32),             # per-step h buffer
        ],
    )


# ---------------------------------------------------------------------------
# Host-side glue
# ---------------------------------------------------------------------------
def _build_zc(params, z, condition):
    """One-time (1, ZC_PAD) row [z, tense_embedding[condition], 0...]."""
    cond_idx = jnp.clip(jnp.asarray(condition, jnp.int32), 0, N_TENSES - 1)
    cond_row = params["tense_emb"][cond_idx]                         # (COND,)
    z_row = jnp.reshape(jnp.asarray(z, jnp.float32), (LATENT_SIZE,))
    zc = jnp.zeros((ZC_PAD,), jnp.float32)
    zc = zc.at[:LATENT_SIZE].set(z_row)
    zc = zc.at[LATENT_SIZE:LATENT_SIZE + COND_SIZE].set(cond_row)
    return zc[None, :]


def decode_sequence(params, tokens, *, hidden=None, z=None, condition=0, first=False):
    """Run T decoder steps in one fused pallas_call (teacher forcing).

    Returns (logits (T, OUTPUT_SIZE), hidden=(h (1,1,H), c (1,1,H))).
    """
    tokens = jnp.asarray(tokens, jnp.int32).reshape(-1)
    T = int(tokens.shape[0])
    T_pad = max(8, _round_up(T, 8))
    if first:
        zc = _build_zc(params, z, condition)
        h0 = jnp.zeros((1, HIDDEN_SIZE), jnp.float32)
        c0 = jnp.zeros((1, HIDDEN_SIZE), jnp.float32)
    else:
        if hidden is None:
            raise ValueError("hidden must be provided when first=False")
        zc = jnp.zeros((1, ZC_PAD), jnp.float32)
        h0 = jnp.reshape(hidden[0], (1, HIDDEN_SIZE))
        c0 = jnp.reshape(hidden[1], (1, HIDDEN_SIZE))

    logits_pad, h1, c1 = pl.pallas_call(
        _make_decode_kernel(first, T),
        out_shape=(
            jax.ShapeDtypeStruct((T_pad, V_PAD), jnp.float32),
            jax.ShapeDtypeStruct((1, HIDDEN_SIZE), jnp.float32),
            jax.ShapeDtypeStruct((1, HIDDEN_SIZE), jnp.float32),
        ),
        grid_spec=_grid_spec(T_pad),
        compiler_params=pltpu.CompilerParams(dimension_semantics=("arbitrary",)),
    )(tokens, zc, h0, c0,
      params["embedding"], params["w_fused"], params["b_fused"],
      params["w_out"], params["b_out"], params["w_l2h"], params["b_l2h"])

    logits = logits_pad[:T, :OUTPUT_SIZE]
    hidden = (h1.reshape(1, 1, HIDDEN_SIZE), c1.reshape(1, 1, HIDDEN_SIZE))
    return logits, hidden


def decoder_rnn_forward(params, input_token, hidden, encoder_outputs=None,
                        first=False, z=0, condition=0):
    """Mirrors DecoderRNN.forward (single step). Returns (logits (1,V), hidden, attn=None)."""
    tokens = jnp.reshape(jnp.asarray(input_token, jnp.int32), (1,))
    logits, hidden = decode_sequence(params, tokens, hidden=hidden, z=z,
                                     condition=condition, first=first)
    # NB: self.softmax (LogSoftmax) is defined in __init__ but never applied in
    # forward, so raw logits are returned, matching the reference.
    return logits, hidden, None


def init_params(key):
    ks = jax.random.split(key, 9)
    s = 0.1
    f32, bf16 = jnp.float32, jnp.bfloat16
    w_ih = s * jax.random.normal(ks[2], (HIDDEN_SIZE, 4 * HIDDEN_SIZE), f32)
    w_hh = s * jax.random.normal(ks[3], (HIDDEN_SIZE, 4 * HIDDEN_SIZE), f32)
    b_ih = s * jax.random.normal(ks[4], (1, 4 * HIDDEN_SIZE), f32)
    b_hh = s * jax.random.normal(ks[5], (1, 4 * HIDDEN_SIZE), f32)
    w_l2h_z = s * jax.random.normal(ks[7], (LATENT_SIZE, HIDDEN_SIZE), f32)
    w_l2h_c = s * jax.random.normal(ks[8], (COND_SIZE, HIDDEN_SIZE), f32)
    w_l2h = jnp.zeros((ZC_PAD, HIDDEN_SIZE), f32)
    w_l2h = w_l2h.at[:LATENT_SIZE].set(w_l2h_z)
    w_l2h = w_l2h.at[LATENT_SIZE:LATENT_SIZE + COND_SIZE].set(w_l2h_c)
    w_out = s * jax.random.normal(ks[6], (HIDDEN_SIZE, OUTPUT_SIZE), f32)
    w_out_pad = jnp.zeros((HIDDEN_SIZE, V_PAD), f32).at[:, :OUTPUT_SIZE].set(w_out)
    return {
        # embedding kept f32 (tiny) so the dynamic row gather stays on the plain path
        "embedding": s * jax.random.normal(ks[0], (OUTPUT_SIZE, HIDDEN_SIZE), f32),
        "tense_emb": s * jax.random.normal(ks[1], (N_TENSES, COND_SIZE), f32),
        # fused LSTM weight [W_ih; W_hh] (2H, 4H) bf16; pre-summed bias (f32)
        "w_fused": jnp.concatenate([w_ih, w_hh], axis=0).astype(bf16),
        "b_fused": b_ih + b_hh,
        # output linear, lane-padded to V_PAD
        "w_out": w_out_pad.astype(bf16),
        "b_out": jnp.zeros((1, V_PAD), f32),
        # latent2hidden combined [W_z; W_c] padded to ZC_PAD rows
        "w_l2h": w_l2h.astype(bf16),
        "b_l2h": jnp.zeros((1, HIDDEN_SIZE), f32),
    }


# ---------------------------------------------------------------------------
# Pure-JAX reference (same math, same bf16 rounding at matmul inputs)
# ---------------------------------------------------------------------------
def _reference_decode(params, tokens, *, hidden=None, z=None, condition=0, first=False):
    f32, bf16 = jnp.float32, jnp.bfloat16
    H = HIDDEN_SIZE
    emb = params["embedding"]
    wf = params["w_fused"].astype(f32)
    bfb = params["b_fused"]
    wo = params["w_out"].astype(f32)
    bo = params["b_out"]
    wl = params["w_l2h"].astype(f32)
    bl = params["b_l2h"]
    if first:
        zc = _build_zc(params, z, condition)
        h = zc.astype(bf16).astype(f32) @ wl + bl
        c = jnp.zeros((1, H), f32)
    else:
        h = jnp.reshape(hidden[0], (1, H))
        c = jnp.reshape(hidden[1], (1, H))
    outs = []
    for t in range(int(tokens.shape[0])):
        tok = int(tokens[t])
        x = jnp.maximum(emb[tok:tok + 1, :], 0.0)
        xh = jnp.concatenate([x, h], axis=1)
        gates = xh.astype(bf16).astype(f32) @ wf + bfb
        i = jax.nn.sigmoid(gates[:, :H])
        f = jax.nn.sigmoid(gates[:, H:2 * H])
        g = jnp.tanh(gates[:, 2 * H:3 * H])
        o = jax.nn.sigmoid(gates[:, 3 * H:4 * H])
        c = f * c + i * g
        h = o * jnp.tanh(c)
        outs.append(h.astype(bf16).astype(f32) @ wo + bo)
    logits = jnp.concatenate(outs, axis=0)[:, :OUTPUT_SIZE]
    return logits, (h.reshape(1, 1, H), c.reshape(1, 1, H))


if __name__ == "__main__":
    key = jax.random.PRNGKey(0)
    params = init_params(key)

    z = jax.random.normal(jax.random.fold_in(key, 123), (1, LATENT_SIZE), jnp.float32)
    condition = 1

    tokens_a = jnp.array([0, 3, 5, 1, 7, 2, 6, 4], dtype=jnp.int32)   # first segment (SOS-led)
    tokens_b = jnp.array([9, 11, 4, 2], dtype=jnp.int32)              # continuation

    # First call: hidden built from (z, condition) via latent2hidden, 8 fused steps.
    logits_a, hidden = decode_sequence(params, tokens_a, z=z, condition=condition, first=True)
    # Second call: continue from carried hidden state, 4 fused steps.
    logits_b, hidden = decode_sequence(params, tokens_b, hidden=hidden, first=False)
    # Single-step API mirroring DecoderRNN.forward.
    step_logits, hidden, attn = decoder_rnn_forward(params, 3, hidden, first=False)

    jax.block_until_ready((logits_a, logits_b, step_logits, hidden))

    # Correctness vs. pure-JAX reference of the same computation.
    ref_a, ref_hidden = _reference_decode(params, tokens_a, z=z, condition=condition, first=True)
    ref_b, ref_hidden = _reference_decode(params, tokens_b, hidden=ref_hidden, first=False)
    ref_s, ref_hidden = _reference_decode(params, jnp.array([3], jnp.int32),
                                          hidden=ref_hidden, first=False)

    assert logits_a.shape == (tokens_a.shape[0], OUTPUT_SIZE)
    assert logits_b.shape == (tokens_b.shape[0], OUTPUT_SIZE)
    assert step_logits.shape == (1, OUTPUT_SIZE)
    assert hidden[0].shape == (1, 1, HIDDEN_SIZE) and hidden[1].shape == (1, 1, HIDDEN_SIZE)
    assert attn is None
    assert jnp.allclose(logits_a, ref_a, atol=1e-2, rtol=1e-2)
    assert jnp.allclose(logits_b, ref_b, atol=1e-2, rtol=1e-2)
    assert jnp.allclose(step_logits, ref_s, atol=1e-2, rtol=1e-2)
    assert jnp.allclose(hidden[0].reshape(-1), ref_hidden[0].reshape(-1), atol=1e-2, rtol=1e-2)
    assert jnp.allclose(hidden[1].reshape(-1), ref_hidden[1].reshape(-1), atol=1e-2, rtol=1e-2)
    print("KERNEL_OK")
</pallas_src>

<mosaic_0001>
module attributes {stable_mosaic.version = 11 : i64} {
  func.func @kernel(%arg0: i32, %arg1: memref<8xi32, #tpu.memory_space<smem>>, %arg2: memref<1x128xf32, #tpu.memory_space<vmem>>, %arg3: memref<1x128xf32, #tpu.memory_space<vmem>>, %arg4: memref<1x128xf32, #tpu.memory_space<vmem>>, %arg5: memref<28x128xf32, #tpu.memory_space<vmem>>, %arg6: memref<256x512xbf16, #tpu.memory_space<vmem>>, %arg7: memref<1x512xf32, #tpu.memory_space<vmem>>, %arg8: memref<128x128xbf16, #tpu.memory_space<vmem>>, %arg9: memref<1x128xf32, #tpu.memory_space<vmem>>, %arg10: memref<128x128xbf16, #tpu.memory_space<vmem>>, %arg11: memref<1x128xf32, #tpu.memory_space<vmem>>, %arg12: memref<8x128xf32, #tpu.memory_space<vmem>>, %arg13: memref<1x128xf32, #tpu.memory_space<vmem>>, %arg14: memref<1x128xf32, #tpu.memory_space<vmem>>, %arg15: memref<8x128xf32, #tpu.memory_space<vmem>>) attributes {dimension_semantics = [#tpu.dimension_semantics<arbitrary>], iteration_bounds = array<i64: 1>, scalar_prefetch = 1 : i64, scratch_operands = 1 : i64, tpu.core_type = #tpu.core_type<tc>, window_params = [{pipeline_mode = #tpu.pipeline_mode<synchronous>, transform_indices = @transform_0, window_bounds = array<i64: 1, 128>}, {pipeline_mode = #tpu.pipeline_mode<synchronous>, transform_indices = @transform_1, window_bounds = array<i64: 1, 128>}, {pipeline_mode = #tpu.pipeline_mode<synchronous>, transform_indices = @transform_2, window_bounds = array<i64: 1, 128>}, {pipeline_mode = #tpu.pipeline_mode<synchronous>, transform_indices = @transform_3, window_bounds = array<i64: 28, 128>}, {pipeline_mode = #tpu.pipeline_mode<synchronous>, transform_indices = @transform_4, window_bounds = array<i64: 256, 512>}, {pipeline_mode = #tpu.pipeline_mode<synchronous>, transform_indices = @transform_5, window_bounds = array<i64: 1, 512>}, {pipeline_mode = #tpu.pipeline_mode<synchronous>, transform_indices = @transform_6, window_bounds = array<i64: 128, 128>}, {pipeline_mode = #tpu.pipeline_mode<synchronous>, transform_indices = @transform_7, window_bounds = array<i64: 1, 128>}, {pipeline_mode = #tpu.pipeline_mode<synchronous>, transform_indices = @transform_8, window_bounds = array<i64: 128, 128>}, {pipeline_mode = #tpu.pipeline_mode<synchronous>, transform_indices = @transform_9, window_bounds = array<i64: 1, 128>}, {pipeline_mode = #tpu.pipeline_mode<synchronous>, transform_indices = @transform_10, window_bounds = array<i64: 8, 128>}, {pipeline_mode = #tpu.pipeline_mode<synchronous>, transform_indices = @transform_11, window_bounds = array<i64: 1, 128>}, {pipeline_mode = #tpu.pipeline_mode<synchronous>, transform_indices = @transform_12, window_bounds = array<i64: 1, 128>}]} {
    %c0 = arith.constant 0 : index
    %c0_0 = arith.constant 0 : index
    %0 = vector.load %arg2[%c0, %c0_0] : memref<1x128xf32, #tpu.memory_space<vmem>>, vector<1x128xf32>
    %1 = arith.truncf %0 : vector<1x128xf32> to vector<1x128xbf16>
    %c0_1 = arith.constant 0 : index
    %c0_2 = arith.constant 0 : index
    %2 = vector.load %arg10[%c0_1, %c0_2] : memref<128x128xbf16, #tpu.memory_space<vmem>>, vector<128x128xbf16>
    %cst = arith.constant dense<0.000000e+00> : vector<1x128xf32>
    %3 = tpu.matmul %1, %2, %cst {dimension_numbers = #tpu.dot_dimension_numbers<[1], [0], [0], [1], [0, 0, 1, 1], [], []>} : vector<1x128xbf16>, vector<128x128xbf16>, vector<1x128xf32> -> vector<1x128xf32>
    %c0_3 = arith.constant 0 : index
    %c0_4 = arith.constant 0 : index
    %4 = vector.load %arg11[%c0_3, %c0_4] : memref<1x128xf32, #tpu.memory_space<vmem>>, vector<1x128xf32>
    %5 = arith.addf %3, %4 : vector<1x128xf32>
    %cst_5 = arith.constant 0.000000e+00 : f32
    %6 = vector.broadcast %cst_5 : f32 to vector<1x128xf32>
    %cst_6 = arith.constant 0.000000e+00 : f32
    %7 = vector.broadcast %cst_6 : f32 to vector<8x128xf32>
    %c0_7 = arith.constant 0 : index
    %c0_8 = arith.constant 0 : index
    %8 = vector.load %arg15[%c0_7, %c0_8] : memref<8x128xf32, #tpu.memory_space<vmem>>, vector<8x128xf32>
    tpu.vector_store %arg15[%c0_7, %c0_8], %7 {strides = array<i32>} : memref<8x128xf32, #tpu.memory_space<vmem>>, vector<8x128xf32>,
    %c0_9 = arith.constant 0 : index
    %c0_10 = arith.constant 0 : index
    %9 = vector.load %arg6[%c0_9, %c0_10] : memref<256x512xbf16, #tpu.memory_space<vmem>>, vector<256x512xbf16>
    %c0_11 = arith.constant 0 : index
    %c0_12 = arith.constant 0 : index
    %10 = vector.load %arg7[%c0_11, %c0_12] : memref<1x512xf32, #tpu.memory_space<vmem>>, vector<1x512xf32>
    %c0_13 = arith.constant 0 : index
    %11 = memref.load %arg1[%c0_13] : memref<8xi32, #tpu.memory_space<smem>>
    %c0_i32 = arith.constant 0 : i32
    %c27_i32 = arith.constant 27 : i32
    %12 = arith.maxsi %c0_i32, %11 : i32
    %13 = arith.minsi %c27_i32, %12 : i32
    %14 = arith.index_cast %13 : i32 to index
    %c0_14 = arith.constant 0 : index
    %15 = vector.load %arg5[%14, %c0_14] : memref<28x128xf32, #tpu.memory_space<vmem>>, vector<1x128xf32>
    %cst_15 = arith.constant 0.000000e+00 : f32
    %16 = vector.broadcast %cst_15 : f32 to vector<1x128xf32>
    %17 = arith.maximumf %15, %16 : vector<1x128xf32>
    %18 = tpu.concatenate %17, %5 in 1 : vector<1x128xf32>, vector<1x128xf32> -> vector<1x256xf32>
    %19 = arith.truncf %18 : vector<1x256xf32> to vector<1x256xbf16>
    %cst_16 = arith.constant dense<0.000000e+00> : vector<1x512xf32>
    %20 = tpu.matmul %19, %9, %cst_16 {dimension_numbers = #tpu.dot_dimension_numbers<[1], [0], [0], [1], [0, 0, 1, 1], [], []>} : vector<1x256xbf16>, vector<256x512xbf16>, vector<1x512xf32> -> vector<1x512xf32>
    %21 = arith.addf %20, %10 : vector<1x512xf32>
    %22 = vector.extract_strided_slice %21 {offsets = [0, 0], sizes = [1, 128], strides = [1, 1]} : vector<1x512xf32> to vector<1x128xf32>
    %23 = arith.negf %22 : vector<1x128xf32>
    %24 = math.exp %23 : vector<1x128xf32>
    %cst_17 = arith.constant 1.000000e+00 : f32
    %25 = vector.broadcast %cst_17 : f32 to vector<1x128xf32>
    %26 = arith.addf %25, %24 : vector<1x128xf32>
    %27 = arith.divf %25, %26 : vector<1x128xf32>
    %28 = vector.extract_strided_slice %21 {offsets = [0, 128], sizes = [1, 128], strides = [1, 1]} : vector<1x512xf32> to vector<1x128xf32>
    %29 = arith.negf %28 : vector<1x128xf32>
    %30 = math.exp %29 : vector<1x128xf32>
    %cst_18 = arith.constant 1.000000e+00 : f32
    %31 = vector.broadcast %cst_18 : f32 to vector<1x128xf32>
    %32 = arith.addf %31, %30 : vector<1x128xf32>
    %33 = arith.divf %31, %32 : vector<1x128xf32>
    %34 = vector.extract_strided_slice %21 {offsets = [0, 256], sizes = [1, 128], strides = [1, 1]} : vector<1x512xf32> to vector<1x128xf32>
    %35 = math.tanh %34 : vector<1x128xf32>
    %36 = vector.extract_strided_slice %21 {offsets = [0, 384], sizes = [1, 128], strides = [1, 1]} : vector<1x512xf32> to vector<1x128xf32>
    %37 = arith.negf %36 : vector<1x128xf32>
    %38 = math.exp %37 : vector<1x128xf32>
    %cst_19 = arith.constant 1.000000e+00 : f32
    %39 = vector.broadcast %cst_19 : f32 to vector<1x128xf32>
    %40 = arith.addf %39, %38 : vector<1x128xf32>
    %41 = arith.divf %39, %40 : vector<1x128xf32>
    %42 = arith.mulf %33, %6 : vector<1x128xf32>
    %43 = arith.mulf %27, %35 : vector<1x128xf32>
    %44 = arith.addf %42, %43 : vector<1x128xf32>
    %45 = math.tanh %44 : vector<1x128xf32>
    %46 = arith.mulf %41, %45 : vector<1x128xf32>
    %c0_20 = arith.constant 0 : index
    %c0_21 = arith.constant 0 : index
    %47 = vector.load %arg15[%c0_20, %c0_21] : memref<8x128xf32, #tpu.memory_space<vmem>>, vector<1x128xf32>
    tpu.vector_store %arg15[%c0_20, %c0_21], %46 {strides = array<i32>} : memref<8x128xf32, #tpu.memory_space<vmem>>, vector<1x128xf32>,
    %c1 = arith.constant 1 : index
    %48 = memref.load %arg1[%c1] : memref<8xi32, #tpu.memory_space<smem>>
    %c0_i32_22 = arith.constant 0 : i32
    %c27_i32_23 = arith.constant 27 : i32
    %49 = arith.maxsi %c0_i32_22, %48 : i32
    %50 = arith.minsi %c27_i32_23, %49 : i32
    %51 = arith.index_cast %50 : i32 to index
    %c0_24 = arith.constant 0 : index
    %52 = vector.load %arg5[%51, %c0_24] : memref<28x128xf32, #tpu.memory_space<vmem>>, vector<1x128xf32>
    %cst_25 = arith.constant 0.000000e+00 : f32
    %53 = vector.broadcast %cst_25 : f32 to vector<1x128xf32>
    %54 = arith.maximumf %52, %53 : vector<1x128xf32>
    %55 = tpu.concatenate %54, %46 in 1 : vector<1x128xf32>, vector<1x128xf32> -> vector<1x256xf32>
    %56 = arith.truncf %55 : vector<1x256xf32> to vector<1x256xbf16>
    %cst_26 = arith.constant dense<0.000000e+00> : vector<1x512xf32>
    %57 = tpu.matmul %56, %9, %cst_26 {dimension_numbers = #tpu.dot_dimension_numbers<[1], [0], [0], [1], [0, 0, 1, 1], [], []>} : vector<1x256xbf16>, vector<256x512xbf16>, vector<1x512xf32> -> vector<1x512xf32>
    %58 = arith.addf %57, %10 : vector<1x512xf32>
    %59 = vector.extract_strided_slice %58 {offsets = [0, 0], sizes = [1, 128], strides = [1, 1]} : vector<1x512xf32> to vector<1x128xf32>
    %60 = arith.negf %59 : vector<1x128xf32>
    %61 = math.exp %60 : vector<1x128xf32>
    %cst_27 = arith.constant 1.000000e+00 : f32
    %62 = vector.broadcast %cst_27 : f32 to vector<1x128xf32>
    %63 = arith.addf %62, %61 : vector<1x128xf32>
    %64 = arith.divf %62, %63 : vector<1x128xf32>
    %65 = vector.extract_strided_slice %58 {offsets = [0, 128], sizes = [1, 128], strides = [1, 1]} : vector<1x512xf32> to vector<1x128xf32>
    %66 = arith.negf %65 : vector<1x128xf32>
    %67 = math.exp %66 : vector<1x128xf32>
    %cst_28 = arith.constant 1.000000e+00 : f32
    %68 = vector.broadcast %cst_28 : f32 to vector<1x128xf32>
    %69 = arith.addf %68, %67 : vector<1x128xf32>
    %70 = arith.divf %68, %69 : vector<1x128xf32>
    %71 = vector.extract_strided_slice %58 {offsets = [0, 256], sizes = [1, 128], strides = [1, 1]} : vector<1x512xf32> to vector<1x128xf32>
    %72 = math.tanh %71 : vector<1x128xf32>
    %73 = vector.extract_strided_slice %58 {offsets = [0, 384], sizes = [1, 128], strides = [1, 1]} : vector<1x512xf32> to vector<1x128xf32>
    %74 = arith.negf %73 : vector<1x128xf32>
    %75 = math.exp %74 : vector<1x128xf32>
    %cst_29 = arith.constant 1.000000e+00 : f32
    %76 = vector.broadcast %cst_29 : f32 to vector<1x128xf32>
    %77 = arith.addf %76, %75 : vector<1x128xf32>
    %78 = arith.divf %76, %77 : vector<1x128xf32>
    %79 = arith.mulf %70, %44 : vector<1x128xf32>
    %80 = arith.mulf %64, %72 : vector<1x128xf32>
    %81 = arith.addf %79, %80 : vector<1x128xf32>
    %82 = math.tanh %81 : vector<1x128xf32>
    %83 = arith.mulf %78, %82 : vector<1x128xf32>
    %c1_30 = arith.constant 1 : index
    %c0_31 = arith.constant 0 : index
    %84 = vector.load %arg15[%c1_30, %c0_31] : memref<8x128xf32, #tpu.memory_space<vmem>>, vector<1x128xf32>
    tpu.vector_store %arg15[%c1_30, %c0_31], %83 {strides = array<i32>} : memref<8x128xf32, #tpu.memory_space<vmem>>, vector<1x128xf32>,
    %c2 = arith.constant 2 : index
    %85 = memref.load %arg1[%c2] : memref<8xi32, #tpu.memory_space<smem>>
    %c0_i32_32 = arith.constant 0 : i32
    %c27_i32_33 = arith.constant 27 : i32
    %86 = arith.maxsi %c0_i32_32, %85 : i32
    %87 = arith.minsi %c27_i32_33, %86 : i32
    %88 = arith.index_cast %87 : i32 to index
    %c0_34 = arith.constant 0 : index
    %89 = vector.load %arg5[%88, %c0_34] : memref<28x128xf32, #tpu.memory_space<vmem>>, vector<1x128xf32>
    %cst_35 = arith.constant 0.000000e+00 : f32
    %90 = vector.broadcast %cst_35 : f32 to vector<1x128xf32>
    %91 = arith.maximumf %89, %90 : vector<1x128xf32>
    %92 = tpu.concatenate %91, %83 in 1 : vector<1x128xf32>, vector<1x128xf32> -> vector<1x256xf32>
    %93 = arith.truncf %92 : vector<1x256xf32> to vector<1x256xbf16>
    %cst_36 = arith.constant dense<0.000000e+00> : vector<1x512xf32>
    %94 = tpu.matmul %93, %9, %cst_36 {dimension_numbers = #tpu.dot_dimension_numbers<[1], [0], [0], [1], [0, 0, 1, 1], [], []>} : vector<1x256xbf16>, vector<256x512xbf16>, vector<1x512xf32> -> vector<1x512xf32>
    %95 = arith.addf %94, %10 : vector<1x512xf32>
    %96 = vector.extract_strided_slice %95 {offsets = [0, 0], sizes = [1, 128], strides = [1, 1]} : vector<1x512xf32> to vector<1x128xf32>
    %97 = arith.negf %96 : vector<1x128xf32>
    %98 = math.exp %97 : vector<1x128xf32>
    %cst_37 = arith.constant 1.000000e+00 : f32
    %99 = vector.broadcast %cst_37 : f32 to vector<1x128xf32>
    %100 = arith.addf %99, %98 : vector<1x128xf32>
    %101 = arith.divf %99, %100 : vector<1x128xf32>
    %102 = vector.extract_strided_slice %95 {offsets = [0, 128], sizes = [1, 128], strides = [1, 1]} : vector<1x512xf32> to vector<1x128xf32>
    %103 = arith.negf %102 : vector<1x128xf32>
    %104 = math.exp %103 : vector<1x128xf32>
    %cst_38 = arith.constant 1.000000e+00 : f32
    %105 = vector.broadcast %cst_38 : f32 to vector<1x128xf32>
    %106 = arith.addf %105, %104 : vector<1x128xf32>
    %107 = arith.divf %105, %106 : vector<1x128xf32>
    %108 = vector.extract_strided_slice %95 {offsets = [0, 256], sizes = [1, 128], strides = [1, 1]} : vector<1x512xf32> to vector<1x128xf32>
    %109 = math.tanh %108 : vector<1x128xf32>
    %110 = vector.extract_strided_slice %95 {offsets = [0, 384], sizes = [1, 128], strides = [1, 1]} : vector<1x512xf32> to vector<1x128xf32>
    %111 = arith.negf %110 : vector<1x128xf32>
    %112 = math.exp %111 : vector<1x128xf32>
    %cst_39 = arith.constant 1.000000e+00 : f32
    %113 = vector.broadcast %cst_39 : f32 to vector<1x128xf32>
    %114 = arith.addf %113, %112 : vector<1x128xf32>
    %115 = arith.divf %113, %114 : vector<1x128xf32>
    %116 = arith.mulf %107, %81 : vector<1x128xf32>
    %117 = arith.mulf %101, %109 : vector<1x128xf32>
    %118 = arith.addf %116, %117 : vector<1x128xf32>
    %119 = math.tanh %118 : vector<1x128xf32>
    %120 = arith.mulf %115, %119 : vector<1x128xf32>
    %c2_40 = arith.constant 2 : index
    %c0_41 = arith.constant 0 : index
    %121 = vector.load %arg15[%c2_40, %c0_41] : memref<8x128xf32, #tpu.memory_space<vmem>>, vector<1x128xf32>
    tpu.vector_store %arg15[%c2_40, %c0_41], %120 {strides = array<i32>} : memref<8x128xf32, #tpu.memory_space<vmem>>, vector<1x128xf32>,
    %c3 = arith.constant 3 : index
    %122 = memref.load %arg1[%c3] : memref<8xi32, #tpu.memory_space<smem>>
    %c0_i32_42 = arith.constant 0 : i32
    %c27_i32_43 = arith.constant 27 : i32
    %123 = arith.maxsi %c0_i32_42, %122 : i32
    %124 = arith.minsi %c27_i32_43, %123 : i32
    %125 = arith.index_cast %124 : i32 to index
    %c0_44 = arith.constant 0 : index
    %126 = vector.load %arg5[%125, %c0_44] : memref<28x128xf32, #tpu.memory_space<vmem>>, vector<1x128xf32>
    %cst_45 = arith.constant 0.000000e+00 : f32
    %127 = vector.broadcast %cst_45 : f32 to vector<1x128xf32>
    %128 = arith.maximumf %126, %127 : vector<1x128xf32>
    %129 = tpu.concatenate %128, %120 in 1 : vector<1x128xf32>, vector<1x128xf32> -> vector<1x256xf32>
    %130 = arith.truncf %129 : vector<1x256xf32> to vector<1x256xbf16>
    %cst_46 = arith.constant dense<0.000000e+00> : vector<1x512xf32>
    %131 = tpu.matmul %130, %9, %cst_46 {dimension_numbers = #tpu.dot_dimension_numbers<[1], [0], [0], [1], [0, 0, 1, 1], [], []>} : vector<1x256xbf16>, vector<256x512xbf16>, vector<1x512xf32> -> vector<1x512xf32>
    %132 = arith.addf %131, %10 : vector<1x512xf32>
    %133 = vector.extract_strided_slice %132 {offsets = [0, 0], sizes = [1, 128], strides = [1, 1]} : vector<1x512xf32> to vector<1x128xf32>
    %134 = arith.negf %133 : vector<1x128xf32>
    %135 = math.exp %134 : vector<1x128xf32>
    %cst_47 = arith.constant 1.000000e+00 : f32
    %136 = vector.broadcast %cst_47 : f32 to vector<1x128xf32>
    %137 = arith.addf %136, %135 : vector<1x128xf32>
    %138 = arith.divf %136, %137 : vector<1x128xf32>
    %139 = vector.extract_strided_slice %132 {offsets = [0, 128], sizes = [1, 128], strides = [1, 1]} : vector<1x512xf32> to vector<1x128xf32>
    %140 = arith.negf %139 : vector<1x128xf32>
    %141 = math.exp %140 : vector<1x128xf32>
    %cst_48 = arith.constant 1.000000e+00 : f32
    %142 = vector.broadcast %cst_48 : f32 to vector<1x128xf32>
    %143 = arith.addf %142, %141 : vector<1x128xf32>
    %144 = arith.divf %142, %143 : vector<1x128xf32>
    %145 = vector.extract_strided_slice %132 {offsets = [0, 256], sizes = [1, 128], strides = [1, 1]} : vector<1x512xf32> to vector<1x128xf32>
    %146 = math.tanh %145 : vector<1x128xf32>
    %147 = vector.extract_strided_slice %132 {offsets = [0, 384], sizes = [1, 128], strides = [1, 1]} : vector<1x512xf32> to vector<1x128xf32>
    %148 = arith.negf %147 : vector<1x128xf32>
    %149 = math.exp %148 : vector<1x128xf32>
    %cst_49 = arith.constant 1.000000e+00 : f32
    %150 = vector.broadcast %cst_49 : f32 to vector<1x128xf32>
    %151 = arith.addf %150, %149 : vector<1x128xf32>
    %152 = arith.divf %150, %151 : vector<1x128xf32>
    %153 = arith.mulf %144, %118 : vector<1x128xf32>
    %154 = arith.mulf %138, %146 : vector<1x128xf32>
    %155 = arith.addf %153, %154 : vector<1x128xf32>
    %156 = math.tanh %155 : vector<1x128xf32>
    %157 = arith.mulf %152, %156 : vector<1x128xf32>
    %c3_50 = arith.constant 3 : index
    %c0_51 = arith.constant 0 : index
    %158 = vector.load %arg15[%c3_50, %c0_51] : memref<8x128xf32, #tpu.memory_space<vmem>>, vector<1x128xf32>
    tpu.vector_store %arg15[%c3_50, %c0_51], %157 {strides = array<i32>} : memref<8x128xf32, #tpu.memory_space<vmem>>, vector<1x128xf32>,
    %c4 = arith.constant 4 : index
    %159 = memref.load %arg1[%c4] : memref<8xi32, #tpu.memory_space<smem>>
    %c0_i32_52 = arith.constant 0 : i32
    %c27_i32_53 = arith.constant 27 : i32
    %160 = arith.maxsi %c0_i32_52, %159 : i32
    %161 = arith.minsi %c27_i32_53, %160 : i32
    %162 = arith.index_cast %161 : i32 to index
    %c0_54 = arith.constant 0 : index
    %163 = vector.load %arg5[%162, %c0_54] : memref<28x128xf32, #tpu.memory_space<vmem>>, vector<1x128xf32>
    %cst_55 = arith.constant 0.000000e+00 : f32
    %164 = vector.broadcast %cst_55 : f32 to vector<1x128xf32>
    %165 = arith.maximumf %163, %164 : vector<1x128xf32>
    %166 = tpu.concatenate %165, %157 in 1 : vector<1x128xf32>, vector<1x128xf32> -> vector<1x256xf32>
    %167 = arith.truncf %166 : vector<1x256xf32> to vector<1x256xbf16>
    %cst_56 = arith.constant dense<0.000000e+00> : vector<1x512xf32>
    %168 = tpu.matmul %167, %9, %cst_56 {dimension_numbers = #tpu.dot_dimension_numbers<[1], [0], [0], [1], [0, 0, 1, 1], [], []>} : vector<1x256xbf16>, vector<256x512xbf16>, vector<1x512xf32> -> vector<1x512xf32>
    %169 = arith.addf %168, %10 : vector<1x512xf32>
    %170 = vector.extract_strided_slice %169 {offsets = [0, 0], sizes = [1, 128], strides = [1, 1]} : vector<1x512xf32> to vector<1x128xf32>
    %171 = arith.negf %170 : vector<1x128xf32>
    %172 = math.exp %171 : vector<1x128xf32>
    %cst_57 = arith.constant 1.000000e+00 : f32
    %173 = vector.broadcast %cst_57 : f32 to vector<1x128xf32>
    %174 = arith.addf %173, %172 : vector<1x128xf32>
    %175 = arith.divf %173, %174 : vector<1x128xf32>
    %176 = vector.extract_strided_slice %169 {offsets = [0, 128], sizes = [1, 128], strides = [1, 1]} : vector<1x512xf32> to vector<1x128xf32>
    %177 = arith.negf %176 : vector<1x128xf32>
    %178 = math.exp %177 : vector<1x128xf32>
    %cst_58 = arith.constant 1.000000e+00 : f32
    %179 = vector.broadcast %cst_58 : f32 to vector<1x128xf32>
    %180 = arith.addf %179, %178 : vector<1x128xf32>
    %181 = arith.divf %179, %180 : vector<1x128xf32>
    %182 = vector.extract_strided_slice %169 {offsets = [0, 256], sizes = [1, 128], strides = [1, 1]} : vector<1x512xf32> to vector<1x128xf32>
    %183 = math.tanh %182 : vector<1x128xf32>
    %184 = vector.extract_strided_slice %169 {offsets = [0, 384], sizes = [1, 128], strides = [1, 1]} : vector<1x512xf32> to vector<1x128xf32>
    %185 = arith.negf %184 : vector<1x128xf32>
    %186 = math.exp %185 : vector<1x128xf32>
    %cst_59 = arith.constant 1.000000e+00 : f32
    %187 = vector.broadcast %cst_59 : f32 to vector<1x128xf32>
    %188 = arith.addf %187, %186 : vector<1x128xf32>
    %189 = arith.divf %187, %188 : vector<1x128xf32>
    %190 = arith.mulf %181, %155 : vector<1x128xf32>
    %191 = arith.mulf %175, %183 : vector<1x128xf32>
    %192 = arith.addf %190, %191 : vector<1x128xf32>
    %193 = math.tanh %192 : vector<1x128xf32>
    %194 = arith.mulf %189, %193 : vector<1x128xf32>
    %c4_60 = arith.constant 4 : index
    %c0_61 = arith.constant 0 : index
    %195 = vector.load %arg15[%c4_60, %c0_61] : memref<8x128xf32, #tpu.memory_space<vmem>>, vector<1x128xf32>
    tpu.vector_store %arg15[%c4_60, %c0_61], %194 {strides = array<i32>} : memref<8x128xf32, #tpu.memory_space<vmem>>, vector<1x128xf32>,
    %c5 = arith.constant 5 : index
    %196 = memref.load %arg1[%c5] : memref<8xi32, #tpu.memory_space<smem>>
    %c0_i32_62 = arith.constant 0 : i32
    %c27_i32_63 = arith.constant 27 : i32
    %197 = arith.maxsi %c0_i32_62, %196 : i32
    %198 = arith.minsi %c27_i32_63, %197 : i32
    %199 = arith.index_cast %198 : i32 to index
    %c0_64 = arith.constant 0 : index
    %200 = vector.load %arg5[%199, %c0_64] : memref<28x128xf32, #tpu.memory_space<vmem>>, vector<1x128xf32>
    %cst_65 = arith.constant 0.000000e+00 : f32
    %201 = vector.broadcast %cst_65 : f32 to vector<1x128xf32>
    %202 = arith.maximumf %200, %201 : vector<1x128xf32>
    %203 = tpu.concatenate %202, %194 in 1 : vector<1x128xf32>, vector<1x128xf32> -> vector<1x256xf32>
    %204 = arith.truncf %203 : vector<1x256xf32> to vector<1x256xbf16>
    %cst_66 = arith.constant dense<0.000000e+00> : vector<1x512xf32>
    %205 = tpu.matmul %204, %9, %cst_66 {dimension_numbers = #tpu.dot_dimension_numbers<[1], [0], [0], [1], [0, 0, 1, 1], [], []>} : vector<1x256xbf16>, vector<256x512xbf16>, vector<1x512xf32> -> vector<1x512xf32>
    %206 = arith.addf %205, %10 : vector<1x512xf32>
    %207 = vector.extract_strided_slice %206 {offsets = [0, 0], sizes = [1, 128], strides = [1, 1]} : vector<1x512xf32> to vector<1x128xf32>
    %208 = arith.negf %207 : vector<1x128xf32>
    %209 = math.exp %208 : vector<1x128xf32>
    %cst_67 = arith.constant 1.000000e+00 : f32
    %210 = vector.broadcast %cst_67 : f32 to vector<1x128xf32>
    %211 = arith.addf %210, %209 : vector<1x128xf32>
    %212 = arith.divf %210, %211 : vector<1x128xf32>
    %213 = vector.extract_strided_slice %206 {offsets = [0, 128], sizes = [1, 128], strides = [1, 1]} : vector<1x512xf32> to vector<1x128xf32>
    %214 = arith.negf %213 : vector<1x128xf32>
    %215 = math.exp %214 : vector<1x128xf32>
    %cst_68 = arith.constant 1.000000e+00 : f32
    %216 = vector.broadcast %cst_68 : f32 to vector<1x128xf32>
    %217 = arith.addf %216, %215 : vector<1x128xf32>
    %218 = arith.divf %216, %217 : vector<1x128xf32>
    %219 = vector.extract_strided_slice %206 {offsets = [0, 256], sizes = [1, 128], strides = [1, 1]} : vector<1x512xf32> to vector<1x128xf32>
    %220 = math.tanh %219 : vector<1x128xf32>
    %221 = vector.extract_strided_slice %206 {offsets = [0, 384], sizes = [1, 128], strides = [1, 1]} : vector<1x512xf32> to vector<1x128xf32>
    %222 = arith.negf %221 : vector<1x128xf32>
    %223 = math.exp %222 : vector<1x128xf32>
    %cst_69 = arith.constant 1.000000e+00 : f32
    %224 = vector.broadcast %cst_69 : f32 to vector<1x128xf32>
    %225 = arith.addf %224, %223 : vector<1x128xf32>
    %226 = arith.divf %224, %225 : vector<1x128xf32>
    %227 = arith.mulf %218, %192 : vector<1x128xf32>
    %228 = arith.mulf %212, %220 : vector<1x128xf32>
    %229 = arith.addf %227, %228 : vector<1x128xf32>
    %230 = math.tanh %229 : vector<1x128xf32>
    %231 = arith.mulf %226, %230 : vector<1x128xf32>
    %c5_70 = arith.constant 5 : index
    %c0_71 = arith.constant 0 : index
    %232 = vector.load %arg15[%c5_70, %c0_71] : memref<8x128xf32, #tpu.memory_space<vmem>>, vector<1x128xf32>
    tpu.vector_store %arg15[%c5_70, %c0_71], %231 {strides = array<i32>} : memref<8x128xf32, #tpu.memory_space<vmem>>, vector<1x128xf32>,
    %c6 = arith.constant 6 : index
    %233 = memref.load %arg1[%c6] : memref<8xi32, #tpu.memory_space<smem>>
    %c0_i32_72 = arith.constant 0 : i32
    %c27_i32_73 = arith.constant 27 : i32
    %234 = arith.maxsi %c0_i32_72, %233 : i32
    %235 = arith.minsi %c27_i32_73, %234 : i32
    %236 = arith.index_cast %235 : i32 to index
    %c0_74 = arith.constant 0 : index
    %237 = vector.load %arg5[%236, %c0_74] : memref<28x128xf32, #tpu.memory_space<vmem>>, vector<1x128xf32>
    %cst_75 = arith.constant 0.000000e+00 : f32
    %238 = vector.broadcast %cst_75 : f32 to vector<1x128xf32>
    %239 = arith.maximumf %237, %238 : vector<1x128xf32>
    %240 = tpu.concatenate %239, %231 in 1 : vector<1x128xf32>, vector<1x128xf32> -> vector<1x256xf32>
    %241 = arith.truncf %240 : vector<1x256xf32> to vector<1x256xbf16>
    %cst_76 = arith.constant dense<0.000000e+00> : vector<1x512xf32>
    %242 = tpu.matmul %241, %9, %cst_76 {dimension_numbers = #tpu.dot_dimension_numbers<[1], [0], [0], [1], [0, 0, 1, 1], [], []>} : vector<1x256xbf16>, vector<256x512xbf16>, vector<1x512xf32> -> vector<1x512xf32>
    %243 = arith.addf %242, %10 : vector<1x512xf32>
    %244 = vector.extract_strided_slice %243 {offsets = [0, 0], sizes = [1, 128], strides = [1, 1]} : vector<1x512xf32> to vector<1x128xf32>
    %245 = arith.negf %244 : vector<1x128xf32>
    %246 = math.exp %245 : vector<1x128xf32>
    %cst_77 = arith.constant 1.000000e+00 : f32
    %247 = vector.broadcast %cst_77 : f32 to vector<1x128xf32>
    %248 = arith.addf %247, %246 : vector<1x128xf32>
    %249 = arith.divf %247, %248 : vector<1x128xf32>
    %250 = vector.extract_strided_slice %243 {offsets = [0, 128], sizes = [1, 128], strides = [1, 1]} : vector<1x512xf32> to vector<1x128xf32>
    %251 = arith.negf %250 : vector<1x128xf32>
    %252 = math.exp %251 : vector<1x128xf32>
    %cst_78 = arith.constant 1.000000e+00 : f32
    %253 = vector.broadcast %cst_78 : f32 to vector<1x128xf32>
    %254 = arith.addf %253, %252 : vector<1x128xf32>
    %255 = arith.divf %253, %254 : vector<1x128xf32>
    %256 = vector.extract_strided_slice %243 {offsets = [0, 256], sizes = [1, 128], strides = [1, 1]} : vector<1x512xf32> to vector<1x128xf32>
    %257 = math.tanh %256 : vector<1x128xf32>
    %258 = vector.extract_strided_slice %243 {offsets = [0, 384], sizes = [1, 128], strides = [1, 1]} : vector<1x512xf32> to vector<1x128xf32>
    %259 = arith.negf %258 : vector<1x128xf32>
    %260 = math.exp %259 : vector<1x128xf32>
    %cst_79 = arith.constant 1.000000e+00 : f32
    %261 = vector.broadcast %cst_79 : f32 to vector<1x128xf32>
    %262 = arith.addf %261, %260 : vector<1x128xf32>
    %263 = arith.divf %261, %262 : vector<1x128xf32>
    %264 = arith.mulf %255, %229 : vector<1x128xf32>
    %265 = arith.mulf %249, %257 : vector<1x128xf32>
    %266 = arith.addf %264, %265 : vector<1x128xf32>
    %267 = math.tanh %266 : vector<1x128xf32>
    %268 = arith.mulf %263, %267 : vector<1x128xf32>
    %c6_80 = arith.constant 6 : index
    %c0_81 = arith.constant 0 : index
    %269 = vector.load %arg15[%c6_80, %c0_81] : memref<8x128xf32, #tpu.memory_space<vmem>>, vector<1x128xf32>
    tpu.vector_store %arg15[%c6_80, %c0_81], %268 {strides = array<i32>} : memref<8x128xf32, #tpu.memory_space<vmem>>, vector<1x128xf32>,
    %c7 = arith.constant 7 : index
    %270 = memref.load %arg1[%c7] : memref<8xi32, #tpu.memory_space<smem>>
    %c0_i32_82 = arith.constant 0 : i32
    %c27_i32_83 = arith.constant 27 : i32
    %271 = arith.maxsi %c0_i32_82, %270 : i32
    %272 = arith.minsi %c27_i32_83, %271 : i32
    %273 = arith.index_cast %272 : i32 to index
    %c0_84 = arith.constant 0 : index
    %274 = vector.load %arg5[%273, %c0_84] : memref<28x128xf32, #tpu.memory_space<vmem>>, vector<1x128xf32>
    %cst_85 = arith.constant 0.000000e+00 : f32
    %275 = vector.broadcast %cst_85 : f32 to vector<1x128xf32>
    %276 = arith.maximumf %274, %275 : vector<1x128xf32>
    %277 = tpu.concatenate %276, %268 in 1 : vector<1x128xf32>, vector<1x128xf32> -> vector<1x256xf32>
    %278 = arith.truncf %277 : vector<1x256xf32> to vector<1x256xbf16>
    %cst_86 = arith.constant dense<0.000000e+00> : vector<1x512xf32>
    %279 = tpu.matmul %278, %9, %cst_86 {dimension_numbers = #tpu.dot_dimension_numbers<[1], [0], [0], [1], [0, 0, 1, 1], [], []>} : vector<1x256xbf16>, vector<256x512xbf16>, vector<1x512xf32> -> vector<1x512xf32>
    %280 = arith.addf %279, %10 : vector<1x512xf32>
    %281 = vector.extract_strided_slice %280 {offsets = [0, 0], sizes = [1, 128], strides = [1, 1]} : vector<1x512xf32> to vector<1x128xf32>
    %282 = arith.negf %281 : vector<1x128xf32>
    %283 = math.exp %282 : vector<1x128xf32>
    %cst_87 = arith.constant 1.000000e+00 : f32
    %284 = vector.broadcast %cst_87 : f32 to vector<1x128xf32>
    %285 = arith.addf %284, %283 : vector<1x128xf32>
    %286 = arith.divf %284, %285 : vector<1x128xf32>
    %287 = vector.extract_strided_slice %280 {offsets = [0, 128], sizes = [1, 128], strides = [1, 1]} : vector<1x512xf32> to vector<1x128xf32>
    %288 = arith.negf %287 : vector<1x128xf32>
    %289 = math.exp %288 : vector<1x128xf32>
    %cst_88 = arith.constant 1.000000e+00 : f32
    %290 = vector.broadcast %cst_88 : f32 to vector<1x128xf32>
    %291 = arith.addf %290, %289 : vector<1x128xf32>
    %292 = arith.divf %290, %291 : vector<1x128xf32>
    %293 = vector.extract_strided_slice %280 {offsets = [0, 256], sizes = [1, 128], strides = [1, 1]} : vector<1x512xf32> to vector<1x128xf32>
    %294 = math.tanh %293 : vector<1x128xf32>
    %295 = vector.extract_strided_slice %280 {offsets = [0, 384], sizes = [1, 128], strides = [1, 1]} : vector<1x512xf32> to vector<1x128xf32>
    %296 = arith.negf %295 : vector<1x128xf32>
    %297 = math.exp %296 : vector<1x128xf32>
    %cst_89 = arith.constant 1.000000e+00 : f32
    %298 = vector.broadcast %cst_89 : f32 to vector<1x128xf32>
    %299 = arith.addf %298, %297 : vector<1x128xf32>
    %300 = arith.divf %298, %299 : vector<1x128xf32>
    %301 = arith.mulf %292, %266 : vector<1x128xf32>
    %302 = arith.mulf %286, %294 : vector<1x128xf32>
    %303 = arith.addf %301, %302 : vector<1x128xf32>
    %304 = math.tanh %303 : vector<1x128xf32>
    %305 = arith.mulf %300, %304 : vector<1x128xf32>
    %c7_90 = arith.constant 7 : index
    %c0_91 = arith.constant 0 : index
    %306 = vector.load %arg15[%c7_90, %c0_91] : memref<8x128xf32, #tpu.memory_space<vmem>>, vector<1x128xf32>
    tpu.vector_store %arg15[%c7_90, %c0_91], %305 {strides = array<i32>} : memref<8x128xf32, #tpu.memory_space<vmem>>, vector<1x128xf32>,
    %c0_92 = arith.constant 0 : index
    %c0_93 = arith.constant 0 : index
    %307 = vector.load %arg15[%c0_92, %c0_93] : memref<8x128xf32, #tpu.memory_space<vmem>>, vector<8x128xf32>
    %308 = arith.truncf %307 : vector<8x128xf32> to vector<8x128xbf16>
    %c0_94 = arith.constant 0 : index
    %c0_95 = arith.constant 0 : index
    %309 = vector.load %arg8[%c0_94, %c0_95] : memref<128x128xbf16, #tpu.memory_space<vmem>>, vector<128x128xbf16>
    %cst_96 = arith.constant dense<0.000000e+00> : vector<8x128xf32>
    %310 = tpu.matmul %308, %309, %cst_96 {dimension_numbers = #tpu.dot_dimension_numbers<[1], [0], [0], [1], [0, 0, 1, 1], [], []>} : vector<8x128xbf16>, vector<128x128xbf16>, vector<8x128xf32> -> vector<8x128xf32>
    %c0_97 = arith.constant 0 : index
    %c0_98 = arith.constant 0 : index
    %311 = vector.load %arg9[%c0_97, %c0_98] : memref<1x128xf32, #tpu.memory_space<vmem>>, vector<1x128xf32>
    %312 = vector.broadcast %311 : vector<1x128xf32> to vector<8x128xf32>
    %313 = arith.addf %310, %312 : vector<8x128xf32>
    %c0_99 = arith.constant 0 : index
    %c0_100 = arith.constant 0 : index
    %314 = vector.load %arg12[%c0_99, %c0_100] : memref<8x128xf32, #tpu.memory_space<vmem>>, vector<8x128xf32>
    tpu.vector_store %arg12[%c0_99, %c0_100], %313 {strides = array<i32>} : memref<8x128xf32, #tpu.memory_space<vmem>>, vector<8x128xf32>,
    %c0_101 = arith.constant 0 : index
    %c0_102 = arith.constant 0 : index
    %315 = vector.load %arg13[%c0_101, %c0_102] : memref<1x128xf32, #tpu.memory_space<vmem>>, vector<1x128xf32>
    tpu.vector_store %arg13[%c0_101, %c0_102], %305 {strides = array<i32>} : memref<1x128xf32, #tpu.memory_space<vmem>>, vector<1x128xf32>,
    %c0_103 = arith.constant 0 : index
    %c0_104 = arith.constant 0 : index
    %316 = vector.load %arg14[%c0_103, %c0_104] : memref<1x128xf32, #tpu.memory_space<vmem>>, vector<1x128xf32>
    tpu.vector_store %arg14[%c0_103, %c0_104], %303 {strides = array<i32>} : memref<1x128xf32, #tpu.memory_space<vmem>>, vector<1x128xf32>,
    return
  }
  func.func @transform_0(%arg0: i32, %arg1: memref<8xi32, #tpu.memory_space<smem>>) -> (i32, i32) {
    %c0_i32 = arith.constant 0 : i32
    %c0_i32_0 = arith.constant 0 : i32
    %c0_i32_1 = arith.constant 0 : i32
    return %c0_i32, %c0_i32_0 : i32, i32
  }
  func.func @transform_1(%arg0: i32, %arg1: memref<8xi32, #tpu.memory_space<smem>>) -> (i32, i32) {
    %c0_i32 = arith.constant 0 : i32
    %c0_i32_0 = arith.constant 0 : i32
    %c0_i32_1 = arith.constant 0 : i32
    return %c0_i32, %c0_i32_0 : i32, i32
  }
  func.func @transform_2(%arg0: i32, %arg1: memref<8xi32, #tpu.memory_space<smem>>) -> (i32, i32) {
    %c0_i32 = arith.constant 0 : i32
    %c0_i32_0 = arith.constant 0 : i32
    %c0_i32_1 = arith.constant 0 : i32
    return %c0_i32, %c0_i32_0 : i32, i32
  }
  func.func @transform_3(%arg0: i32, %arg1: memref<8xi32, #tpu.memory_space<smem>>) -> (i32, i32) {
    %c0_i32 = arith.constant 0 : i32
    %c0_i32_0 = arith.constant 0 : i32
    %c0_i32_1 = arith.constant 0 : i32
    return %c0_i32, %c0_i32_0 : i32, i32
  }
  func.func @transform_4(%arg0: i32, %arg1: memref<8xi32, #tpu.memory_space<smem>>) -> (i32, i32) {
    %c0_i32 = arith.constant 0 : i32
    %c0_i32_0 = arith.constant 0 : i32
    %c0_i32_1 = arith.constant 0 : i32
    return %c0_i32, %c0_i32_0 : i32, i32
  }
  func.func @transform_5(%arg0: i32, %arg1: memref<8xi32, #tpu.memory_space<smem>>) -> (i32, i32) {
    %c0_i32 = arith.constant 0 : i32
    %c0_i32_0 = arith.constant 0 : i32
    %c0_i32_1 = arith.constant 0 : i32
    return %c0_i32, %c0_i32_0 : i32, i32
  }
  func.func @transform_6(%arg0: i32, %arg1: memref<8xi32, #tpu.memory_space<smem>>) -> (i32, i32) {
    %c0_i32 = arith.constant 0 : i32
    %c0_i32_0 = arith.constant 0 : i32
    %c0_i32_1 = arith.constant 0 : i32
    return %c0_i32, %c0_i32_0 : i32, i32
  }
  func.func @transform_7(%arg0: i32, %arg1: memref<8xi32, #tpu.memory_space<smem>>) -> (i32, i32) {
    %c0_i32 = arith.constant 0 : i32
    %c0_i32_0 = arith.constant 0 : i32
    %c0_i32_1 = arith.constant 0 : i32
    return %c0_i32, %c0_i32_0 : i32, i32
  }
  func.func @transform_8(%arg0: i32, %arg1: memref<8xi32, #tpu.memory_space<smem>>) -> (i32, i32) {
    %c0_i32 = arith.constant 0 : i32
    %c0_i32_0 = arith.constant 0 : i32
    %c0_i32_1 = arith.constant 0 : i32
    return %c0_i32, %c0_i32_0 : i32, i32
  }
  func.func @transform_9(%arg0: i32, %arg1: memref<8xi32, #tpu.memory_space<smem>>) -> (i32, i32) {
    %c0_i32 = arith.constant 0 : i32
    %c0_i32_0 = arith.constant 0 : i32
    %c0_i32_1 = arith.constant 0 : i32
    return %c0_i32, %c0_i32_0 : i32, i32
  }
  func.func @transform_10(%arg0: i32, %arg1: memref<8xi32, #tpu.memory_space<smem>>) -> (i32, i32) {
    %c0_i32 = arith.constant 0 : i32
    %c0_i32_0 = arith.constant 0 : i32
    %c0_i32_1 = arith.constant 0 : i32
    return %c0_i32, %c0_i32_0 : i32, i32
  }
  func.func @transform_11(%arg0: i32, %arg1: memref<8xi32, #tpu.memory_space<smem>>) -> (i32, i32) {
    %c0_i32 = arith.constant 0 : i32
    %c0_i32_0 = arith.constant 0 : i32
    %c0_i32_1 = arith.constant 0 : i32
    return %c0_i32, %c0_i32_0 : i32, i32
  }
  func.func @transform_12(%arg0: i32, %arg1: memref<8xi32, #tpu.memory_space<smem>>) -> (i32, i32) {
    %c0_i32 = arith.constant 0 : i32
    %c0_i32_0 = arith.constant 0 : i32
    %c0_i32_1 = arith.constant 0 : i32
    return %c0_i32, %c0_i32_0 : i32, i32
  }
}

</mosaic_0001>

<llo_original>
// kernel: tpu_custom_call.1
$region0: #{tpu_custom_call.1}
  #allocation0 [shape = 'u32[]', space=smem, size = 0x4, offset = 0x4, fixed_abs, tag = 'smem constant byte address 0x4 - core index']
  #allocation1 [shape = 'u32[144,128]{1,0:T(1,128)}', space=vmem, size = 0x12000, scoped, tag = 'internal scratch']
  #allocation2 [shape = 'f32[8,128]{1,0:T(8,128)}', space=vmem, size = 0x1000, scoped, tag = 'scratch operand']
  #allocation3 [shape = 's32[1]{0}', space=sflag, size = 0x4, scoped, tag = 'scoped memory for tpu_custom_call.1']
  #allocation4 [shape = 'u8[512]{0}', space=smem, size = 0x200, scoped, tag = 'prefetched SMEM operand 0']
  %s0 = inlined_call_operand.hbm [shape: s32[8], index: 0, kind: input, shape index: {}]
  %s1 = inlined_call_operand.vmem [shape: f32[1,128], index: 1, kind: input, shape index: {}]
  %s2 = inlined_call_operand.vmem [shape: f32[1,128], index: 2, kind: input, shape index: {}]
  %s3 = inlined_call_operand.vmem [shape: f32[1,128], index: 3, kind: input, shape index: {}]
  %s4 = inlined_call_operand.hbm [shape: f32[28,128], index: 4, kind: input, shape index: {}]
  %s5 = inlined_call_operand.hbm [shape: bf16[256,512], index: 5, kind: input, shape index: {}]
  %s6 = inlined_call_operand.vmem [shape: f32[1,512], index: 6, kind: input, shape index: {}]
  %s7 = inlined_call_operand.hbm [shape: bf16[128,128], index: 7, kind: input, shape index: {}]
  %s8 = inlined_call_operand.vmem [shape: f32[1,128], index: 8, kind: input, shape index: {}]
  %s9 = inlined_call_operand.hbm [shape: bf16[128,128], index: 9, kind: input, shape index: {}]
  %s10 = inlined_call_operand.vmem [shape: f32[1,128], index: 10, kind: input, shape index: {}]
  %s11 = inlined_call_operand.hbm [shape: f32[8,128], index: 11, kind: output, shape index: {0}]
  %s12 = inlined_call_operand.hbm [shape: f32[1,128], index: 12, kind: output, shape index: {1}]
  %s13 = inlined_call_operand.hbm [shape: f32[1,128], index: 13, kind: output, shape index: {2}]
  %14 = xla_tuple %s11, %s12, %s13
  %s15 = sld [smem:[#allocation0]]
  $region82: #{tpu_custom_call.1} parent=0
    _
  %s17 = ssub.s32 1, %s15
  %s18 = scalar_select 0, %s17, %s15
  %20 = dma.hbm_to_smem %s0, 16, [#allocation4], [#allocation3]
  %21 = dma.done [#allocation3], 16
  %22 = sfence
  $region1: #{tpu_custom_call.1} parent=0
    #allocation5 [shape = 'u8[16384]{0}', space=vmem, size = 0x4000, scoped, tag = 'input window, operand 4, single buffered']
    #allocation6 [shape = 's32[1]{0}', space=sflag, size = 0x4, scoped, tag = 'scoped memory for tpu_custom_call.1']
    #allocation7 [shape = 's32[1]{0}', space=sflag, size = 0x4, scoped, tag = 'scoped memory for tpu_custom_call.1']
    #allocation8 [shape = 'u8[262144]{0}', space=vmem, size = 0x40000, scoped, tag = 'input window, operand 5, single buffered']
    #allocation9 [shape = 's32[1]{0}', space=sflag, size = 0x4, scoped, tag = 'scoped memory for tpu_custom_call.1']
    #allocation10 [shape = 'u8[32768]{0}', space=vmem, size = 0x8000, scoped, tag = 'input window, operand 7, single buffered']
    #allocation11 [shape = 'u8[32768]{0}', space=vmem, size = 0x8000, scoped, tag = 'input window, operand 9, single buffered']
    #allocation12 [shape = 's32[1]{0}', space=sflag, size = 0x4, scoped, tag = 'scoped memory for tpu_custom_call.1']
    #allocation13 [shape = 'u8[4096]{0}', space=vmem, size = 0x1000, scoped, tag = 'output window, operand 0, single buffered']
    #allocation14 [shape = 'u8[512]{0}', space=vmem, size = 0x400, scoped, tag = 'output window, operand 1, single buffered']
    #allocation15 [shape = 's32[1]{0}', space=sflag, size = 0x4, scoped, tag = 'scoped memory for tpu_custom_call.1']
    #allocation16 [shape = 'u8[512]{0}', space=vmem, size = 0x400, scoped, tag = 'output window, operand 2, single buffered']
    %23 = vsyncpa [#allocation6], 0
    %24 = vsyncpa [#allocation9], 0
    %25 = vsyncpa [#allocation12], 0
    %26 = vsyncpa [#allocation7], 0
    %27 = vsyncpa [#allocation15], 0
    // Predicated region
    $region2: #{tpu_custom_call.1} parent=1 // pred_check
      _
    $region3: #{tpu_custom_call.1} parent=1 // pred_check_branch
      %29 = sbr.rel (0) target = $region5
    $region4: #{tpu_custom_call.1} parent=1 // pred_region
      _
    $region5: #{tpu_custom_call.1} parent=1 // pred_fallthru
      _
    // Predicated region
    $region6: #{tpu_custom_call.1} parent=1 // pred_check
      _
    $region7: #{tpu_custom_call.1} parent=1 // pred_check_branch
      %31 = sbr.rel (0) target = $region9
    $region8: #{tpu_custom_call.1} parent=1 // pred_region
      _
    $region9: #{tpu_custom_call.1} parent=1 // pred_fallthru
      _
    // Predicated region
    $region10: #{tpu_custom_call.1} parent=1 // pred_check
      _
    $region11: #{tpu_custom_call.1} parent=1 // pred_check_branch
      %33 = sbr.rel (0) target = $region13
    $region12: #{tpu_custom_call.1} parent=1 // pred_region
      _
    $region13: #{tpu_custom_call.1} parent=1 // pred_fallthru
      _
    // Predicated region
    $region14: #{tpu_custom_call.1} parent=1 // pred_check
      _
    $region15: #{tpu_custom_call.1} parent=1 // pred_check_branch
      %35 = sbr.rel (0) target = $region17
    $region16: #{tpu_custom_call.1} parent=1 // pred_region
      %s37 = ssub.s32 512, 512
      %38 = vsyncadd [#allocation6], %s37
      %s39 = sshll.u32 [#allocation5], 4
      %s40 = int_to_ptr.vmem [resolvable:$true] %s39
      %45 = dma.hbm_to_vmem [thread:$0]  %s4, 512, %s40, [#allocation6], 128, 128, 8
    $region17: #{tpu_custom_call.1} parent=1 // pred_fallthru
      _
    // Predicated region
    $region18: #{tpu_custom_call.1} parent=1 // pred_check
      _
    $region19: #{tpu_custom_call.1} parent=1 // pred_check_branch
      %47 = sbr.rel (0) target = $region21
    $region20: #{tpu_custom_call.1} parent=1 // pred_region
      %s49 = ssub.s32 8192, 8192
      %50 = vsyncadd [#allocation9], %s49
      %s51 = sshll.u32 [#allocation8], 4
      %s52 = int_to_ptr.vmem [resolvable:$true] %s51
      %57 = dma.hbm_to_vmem [thread:$0]  %s5, 8192, %s52, [#allocation9], 256, 256, 16
    $region21: #{tpu_custom_call.1} parent=1 // pred_fallthru
      _
    // Predicated region
    $region22: #{tpu_custom_call.1} parent=1 // pred_check
      _
    $region23: #{tpu_custom_call.1} parent=1 // pred_check_branch
      %59 = sbr.rel (0) target = $region25
    $region24: #{tpu_custom_call.1} parent=1 // pred_region
      _
    $region25: #{tpu_custom_call.1} parent=1 // pred_fallthru
      _
    // Predicated region
    $region26: #{tpu_custom_call.1} parent=1 // pred_check
      _
    $region27: #{tpu_custom_call.1} parent=1 // pred_check_branch
      %61 = sbr.rel (0) target = $region29
    $region28: #{tpu_custom_call.1} parent=1 // pred_region
      %s63 = ssub.s32 1024, 1024
      %64 = vsyncadd [#allocation9], %s63
      %s65 = sshll.u32 [#allocation10], 4
      %s66 = int_to_ptr.vmem [resolvable:$true] %s65
      %71 = dma.hbm_to_vmem [thread:$0]  %s7, 1024, %s66, [#allocation9], 64, 64, 4
    $region29: #{tpu_custom_call.1} parent=1 // pred_fallthru
      _
    // Predicated region
    $region30: #{tpu_custom_call.1} parent=1 // pred_check
      _
    $region31: #{tpu_custom_call.1} parent=1 // pred_check_branch
      %73 = sbr.rel (0) target = $region33
    $region32: #{tpu_custom_call.1} parent=1 // pred_region
      _
    $region33: #{tpu_custom_call.1} parent=1 // pred_fallthru
      _
    // Predicated region
    $region34: #{tpu_custom_call.1} parent=1 // pred_check
      _
    $region35: #{tpu_custom_call.1} parent=1 // pred_check_branch
      %75 = sbr.rel (0) target = $region37
    $region36: #{tpu_custom_call.1} parent=1 // pred_region
      %s77 = ssub.s32 1024, 1024
      %78 = vsyncadd [#allocation12], %s77
      %s79 = sshll.u32 [#allocation11], 4
      %s80 = int_to_ptr.vmem [resolvable:$true] %s79
      %85 = dma.hbm_to_vmem [thread:$0]  %s9, 1024, %s80, [#allocation12], 64, 64, 4
    $region37: #{tpu_custom_call.1} parent=1 // pred_fallthru
      _
    // Predicated region
    $region38: #{tpu_custom_call.1} parent=1 // pred_check
      _
    $region39: #{tpu_custom_call.1} parent=1 // pred_check_branch
      %87 = sbr.rel (0) target = $region41
    $region40: #{tpu_custom_call.1} parent=1 // pred_region
      _
    $region41: #{tpu_custom_call.1} parent=1 // pred_fallthru
      _
    // Predicated region
    $region42: #{tpu_custom_call.1} parent=1 // pred_check
      _
    $region43: #{tpu_custom_call.1} parent=1 // pred_check_branch
      %89 = sbr.rel (0) target = $region45
    $region44: #{tpu_custom_call.1} parent=1 // pred_region
      %90 = dma.done [#allocation6], 512
    $region45: #{tpu_custom_call.1} parent=1 // pred_fallthru
      _
    // Predicated region
    $region46: #{tpu_custom_call.1} parent=1 // pred_check
      _
    $region47: #{tpu_custom_call.1} parent=1 // pred_check_branch
      %92 = sbr.rel (0) target = $region49
    $region48: #{tpu_custom_call.1} parent=1 // pred_region
      %93 = dma.done [#allocation9], 8192
    $region49: #{tpu_custom_call.1} parent=1 // pred_fallthru
      _
    // Predicated region
    $region50: #{tpu_custom_call.1} parent=1 // pred_check
      _
    $region51: #{tpu_custom_call.1} parent=1 // pred_check_branch
      %95 = sbr.rel (0) target = $region53
    $region52: #{tpu_custom_call.1} parent=1 // pred_region
      %96 = dma.done [#allocation9], 1024
    $region53: #{tpu_custom_call.1} parent=1 // pred_fallthru
      _
    // Predicated region
    $region54: #{tpu_custom_call.1} parent=1 // pred_check
      _
    $region55: #{tpu_custom_call.1} parent=1 // pred_check_branch
      %98 = sbr.rel (0) target = $region57
    $region56: #{tpu_custom_call.1} parent=1 // pred_region
      %99 = dma.done [#allocation12], 1024
    $region57: #{tpu_custom_call.1} parent=1 // pred_fallthru
      _
    %v101 = vld [vmem:[%s1] sm:$0x1]
    %v102 = vpack.c.bf16 %v101, %v101
    %v103 = vld [vmem:[#allocation11] sm:$0xf]
    %v104 = vld [vmem:[#allocation11 + $0x4] sm:$0xf]
    %v105 = vld [vmem:[#allocation11 + $0x8] sm:$0xf]
    %v106 = vld [vmem:[#allocation11 + $0xc] sm:$0xf]
    %v107 = vld [vmem:[#allocation11 + $0x10] sm:$0xf]
    %v108 = vld [vmem:[#allocation11 + $0x14] sm:$0xf]
    %v109 = vld [vmem:[#allocation11 + $0x18] sm:$0xf]
    %v110 = vld [vmem:[#allocation11 + $0x1c] sm:$0xf]
    %v111 = vld [vmem:[#allocation11 + $0x20] sm:$0xf]
    %v112 = vld [vmem:[#allocation11 + $0x24] sm:$0xf]
    %v113 = vld [vmem:[#allocation11 + $0x28] sm:$0xf]
    %v114 = vld [vmem:[#allocation11 + $0x2c] sm:$0xf]
    %v115 = vld [vmem:[#allocation11 + $0x30] sm:$0xf]
    %v116 = vld [vmem:[#allocation11 + $0x34] sm:$0xf]
    %v117 = vld [vmem:[#allocation11 + $0x38] sm:$0xf]
    %v118 = vld [vmem:[#allocation11 + $0x3c] sm:$0xf]
    %v119 = vld [vmem:[%s10] sm:$0x1]
    %v136 = vunpack.c.l.b16 %v103
    %v137 = vunpack.c.l.b16 %v104
    %v138 = vunpack.c.l.b16 %v105
    %v139 = vunpack.c.l.b16 %v106
    %v140 = vunpack.c.l.b16 %v107
    %v141 = vunpack.c.l.b16 %v108
    %v142 = vunpack.c.l.b16 %v109
    %v143 = vunpack.c.l.b16 %v110
    %v144 = vunpack.c.l.b16 %v111
    %v145 = vunpack.c.l.b16 %v112
    %v146 = vunpack.c.l.b16 %v113
    %v147 = vunpack.c.l.b16 %v114
    %v148 = vunpack.c.l.b16 %v115
    %v149 = vunpack.c.l.b16 %v116
    %v150 = vunpack.c.l.b16 %v117
    %v151 = vunpack.c.l.b16 %v118
    %v152 = vpack.c.b16 %v137, %v136
    %v153 = vpack.c.b16 %v139, %v138
    %v154 = vpack.c.b16 %v141, %v140
    %v155 = vpack.c.b16 %v143, %v142
    %v156 = vpack.c.b16 %v145, %v144
    %v157 = vpack.c.b16 %v147, %v146
    %v158 = vpack.c.b16 %v149, %v148
    %v159 = vpack.c.b16 %v151, %v150
    %168 = vmatprep.subr.bf16.mxu0 0
    %169 = vmatpush1.bf16.msra.mxu0 %v152
    %170 = vmatprep.subr.bf16.mxu0 0
    %171 = vmatpush1.bf16.msra.mxu0 %v153
    %172 = vmatprep.subr.bf16.mxu0 0
    %173 = vmatpush1.bf16.msra.mxu0 %v154
    %174 = vmatprep.subr.bf16.mxu0 0
    %175 = vmatpush1.bf16.msra.mxu0 %v155
    %176 = vmatprep.subr.bf16.mxu0 0
    %177 = vmatpush1.bf16.msra.mxu0 %v156
    %178 = vmatprep.subr.bf16.mxu0 0
    %179 = vmatpush1.bf16.msra.mxu0 %v157
    %180 = vmatprep.subr.bf16.mxu0 0
    %181 = vmatpush1.bf16.msra.mxu0 %v158
    %182 = vmatprep.subr.bf16.mxu0 0
    %183 = vmatpush1.bf16.msra.mxu0 %v159
    %184 = vmatprep.subr.bf16.mxu0 0
    %185 = vmatpush1.bf16.msra.mxu0 0
    %186 = vmatprep.subr.bf16.mxu0 0
    %187 = vmatpush1.bf16.msra.mxu0 0
    %188 = vmatprep.subr.bf16.mxu0 0
    %189 = vmatpush1.bf16.msra.mxu0 0
    %190 = vmatprep.subr.bf16.mxu0 0
    %191 = vmatpush1.bf16.msra.mxu0 0
    %192 = vmatprep.subr.bf16.mxu0 0
    %193 = vmatpush1.bf16.msra.mxu0 0
    %194 = vmatprep.subr.bf16.mxu0 0
    %195 = vmatpush1.bf16.msra.mxu0 0
    %196 = vmatprep.subr.bf16.mxu0 0
    %197 = vmatpush1.bf16.msra.mxu0 0
    %198 = vmatprep.subr.bf16.mxu0 0
    %199 = vmatpush1.bf16.msra.mxu0 0
    %200 = vmatprep.mubr.bf16.mxu0 0
    %201 = vmatmul.mubr.bf16.gmra.mrb[0].mxu0 %v102
    %v202 = vpop.f32.mrb[0].mxu0
    %v203 = vadd.f32 %v119, %v202
    %v204 = vpop.f32.mrb[0].mxu0
    %v205 = vpop.f32.mrb[0].mxu0
    %v206 = vpop.f32.mrb[0].mxu0
    %207 = vdwg.mxu0
    %208 = vst [vmem:[#allocation2] sm:$0xff] 0.0
    %v209 = vld [vmem:[#allocation8] sm:$0xff]
    %v210 = vld [vmem:[#allocation8 + $0x8] sm:$0xff]
    %v211 = vld [vmem:[#allocation8 + $0x10] sm:$0xff]
    %v212 = vld [vmem:[#allocation8 + $0x18] sm:$0xff]
    %v213 = vld [vmem:[#allocation8 + $0x20] sm:$0xff]
    %v214 = vld [vmem:[#allocation8 + $0x28] sm:$0xff]
    %v215 = vld [vmem:[#allocation8 + $0x30] sm:$0xff]
    %v216 = vld [vmem:[#allocation8 + $0x38] sm:$0xff]
    %v217 = vld [vmem:[#allocation8 + $0x40] sm:$0xff]
    %v218 = vld [vmem:[#allocation8 + $0x48] sm:$0xff]
    %v219 = vld [vmem:[#allocation8 + $0x50] sm:$0xff]
    %v220 = vld [vmem:[#allocation8 + $0x58] sm:$0xff]
    %v221 = vld [vmem:[#allocation8 + $0x60] sm:$0xff]
    %v222 = vld [vmem:[#allocation8 + $0x68] sm:$0xff]
    %v223 = vld [vmem:[#allocation8 + $0x70] sm:$0xff]
    %v224 = vld [vmem:[#allocation8 + $0x78] sm:$0xff]
    %v225 = vld [vmem:[#allocation8 + $0x80] sm:$0xff]
    %v226 = vld [vmem:[#allocation8 + $0x88] sm:$0xff]
    %v227 = vld [vmem:[#allocation8 + $0x90] sm:$0xff]
    %v228 = vld [vmem:[#allocation8 + $0x98] sm:$0xff]
    %v229 = vld [vmem:[#allocation8 + $0xa0] sm:$0xff]
    %v230 = vld [vmem:[#allocation8 + $0xa8] sm:$0xff]
    %v231 = vld [vmem:[#allocation8 + $0xb0] sm:$0xff]
    %v232 = vld [vmem:[#allocation8 + $0xb8] sm:$0xff]
    %v233 = vld [vmem:[#allocation8 + $0xc0] sm:$0xff]
    %v234 = vld [vmem:[#allocation8 + $0xc8] sm:$0xff]
    %v235 = vld [vmem:[#allocation8 + $0xd0] sm:$0xff]
    %v236 = vld [vmem:[#allocation8 + $0xd8] sm:$0xff]
    %v237 = vld [vmem:[#allocation8 + $0xe0] sm:$0xff]
    %v238 = vld [vmem:[#allocation8 + $0xe8] sm:$0xff]
    %v239 = vld [vmem:[#allocation8 + $0xf0] sm:$0xff]
    %v240 = vld [vmem:[#allocation8 + $0xf8] sm:$0xff]
    %v241 = vld [vmem:[#allocation8 + $0x100] sm:$0xff]
    %v242 = vld [vmem:[#allocation8 + $0x108] sm:$0xff]
    %v243 = vld [vmem:[#allocation8 + $0x110] sm:$0xff]
    %v244 = vld [vmem:[#allocation8 + $0x118] sm:$0xff]
    %v245 = vld [vmem:[#allocation8 + $0x120] sm:$0xff]
    %v246 = vld [vmem:[#allocation8 + $0x128] sm:$0xff]
    %v247 = vld [vmem:[#allocation8 + $0x130] sm:$0xff]
    %v248 = vld [vmem:[#allocation8 + $0x138] sm:$0xff]
    %v249 = vld [vmem:[#allocation8 + $0x140] sm:$0xff]
    %v250 = vld [vmem:[#allocation8 + $0x148] sm:$0xff]
    %v251 = vld [vmem:[#allocation8 + $0x150] sm:$0xff]
    %v252 = vld [vmem:[#allocation8 + $0x158] sm:$0xff]
    %v253 = vld [vmem:[#allocation8 + $0x160] sm:$0xff]
    %v254 = vld [vmem:[#allocation8 + $0x168] sm:$0xff]
    %v255 = vld [vmem:[#allocation8 + $0x170] sm:$0xff]
    %v256 = vld [vmem:[#allocation8 + $0x178] sm:$0xff]
    %v257 = vld [vmem:[#allocation8 + $0x180] sm:$0xff]
    %v258 = vld [vmem:[#allocation8 + $0x188] sm:$0xff]
    %v259 = vld [vmem:[#allocation8 + $0x190] sm:$0xff]
    %v260 = vld [vmem:[#allocation8 + $0x198] sm:$0xff]
    %v261 = vld [vmem:[#allocation8 + $0x1a0] sm:$0xff]
    %v262 = vld [vmem:[#allocation8 + $0x1a8] sm:$0xff]
    %v263 = vld [vmem:[#allocation8 + $0x1b0] sm:$0xff]
    %v264 = vld [vmem:[#allocation8 + $0x1b8] sm:$0xff]
    %v265 = vld [vmem:[#allocation8 + $0x1c0] sm:$0xff]
    %v266 = vld [vmem:[#allocation8 + $0x1c8] sm:$0xff]
    %v267 = vld [vmem:[#allocation8 + $0x1d0] sm:$0xff]
    %v268 = vld [vmem:[#allocation8 + $0x1d8] sm:$0xff]
    %v269 = vld [vmem:[#allocation8 + $0x1e0] sm:$0xff]
    %v270 = vld [vmem:[#allocation8 + $0x1e8] sm:$0xff]
    %v271 = vld [vmem:[#allocation8 + $0x1f0] sm:$0xff]
    %v272 = vld [vmem:[#allocation8 + $0x1f8] sm:$0xff]
    %v273 = vld [vmem:[%s6] sm:$0xf]
    %s274 = sld [smem:[#allocation4]]
    %p275 = scmp.gt.s32.totalorder %s274, 0
    %s276 = scalar_select %p275, %s274, 0
    %p277 = scmp.lt.s32.totalorder %s276, 27
    %s278 = scalar_select %p277, %s276, 27
    %s279 = scalar_lea.vmem [#allocation5], %s278
    %v280 = vld [vmem:[%s279] sm:$0x1]
    %v281 = vmax.f32 %v280, 0.0
    %v282 = vpack.c.bf16 %v281, %v281
    %v283 = vpack.c.bf16 %v203, %v203
    %v348 = vunpack.c.l.b16 %v209
    %v349 = vunpack.c.h.b16 %v209
    %v350 = vunpack.c.l.b16 %v210
    %v351 = vunpack.c.h.b16 %v210
    %v352 = vunpack.c.l.b16 %v211
    %v353 = vunpack.c.h.b16 %v211
    %v354 = vunpack.c.l.b16 %v212
    %v355 = vunpack.c.h.b16 %v212
    %v356 = vunpack.c.l.b16 %v213
    %v357 = vunpack.c.h.b16 %v213
    %v358 = vunpack.c.l.b16 %v214
    %v359 = vunpack.c.h.b16 %v214
    %v360 = vunpack.c.l.b16 %v215
    %v361 = vunpack.c.h.b16 %v215
    %v362 = vunpack.c.l.b16 %v216
    %v363 = vunpack.c.h.b16 %v216
    %v364 = vunpack.c.l.b16 %v217
    %v365 = vunpack.c.h.b16 %v217
    %v366 = vunpack.c.l.b16 %v218
    %v367 = vunpack.c.h.b16 %v218
    %v368 = vunpack.c.l.b16 %v219
    %v369 = vunpack.c.h.b16 %v219
    %v370 = vunpack.c.l.b16 %v220
    %v371 = vunpack.c.h.b16 %v220
    %v372 = vunpack.c.l.b16 %v221
    %v373 = vunpack.c.h.b16 %v221
    %v374 = vunpack.c.l.b16 %v222
    %v375 = vunpack.c.h.b16 %v222
    %v376 = vunpack.c.l.b16 %v223
    %v377 = vunpack.c.h.b16 %v223
    %v378 = vunpack.c.l.b16 %v224
    %v379 = vunpack.c.h.b16 %v224
    %v380 = vunpack.c.l.b16 %v225
    %v381 = vunpack.c.h.b16 %v225
    %v382 = vunpack.c.l.b16 %v226
    %v383 = vunpack.c.h.b16 %v226
    %v384 = vunpack.c.l.b16 %v227
    %v385 = vunpack.c.h.b16 %v227
    %v386 = vunpack.c.l.b16 %v228
    %v387 = vunpack.c.h.b16 %v228
    %v388 = vunpack.c.l.b16 %v229
    %v389 = vunpack.c.h.b16 %v229
    %v390 = vunpack.c.l.b16 %v230
    %v391 = vunpack.c.h.b16 %v230
    %v392 = vunpack.c.l.b16 %v231
    %v393 = vunpack.c.h.b16 %v231
    %v394 = vunpack.c.l.b16 %v232
    %v395 = vunpack.c.h.b16 %v232
    %v396 = vunpack.c.l.b16 %v233
    %v397 = vunpack.c.h.b16 %v233
    %v398 = vunpack.c.l.b16 %v234
    %v399 = vunpack.c.h.b16 %v234
    %v400 = vunpack.c.l.b16 %v235
    %v401 = vunpack.c.h.b16 %v235
    %v402 = vunpack.c.l.b16 %v236
    %v403 = vunpack.c.h.b16 %v236
    %v404 = vunpack.c.l.b16 %v237
    %v405 = vunpack.c.h.b16 %v237
    %v406 = vunpack.c.l.b16 %v238
    %v407 = vunpack.c.h.b16 %v238
    %v408 = vunpack.c.l.b16 %v239
    %v409 = vunpack.c.h.b16 %v239
    %v410 = vunpack.c.l.b16 %v240
    %v411 = vunpack.c.h.b16 %v240
    %v412 = vunpack.c.l.b16 %v241
    %v413 = vunpack.c.h.b16 %v241
    %v414 = vunpack.c.l.b16 %v242
    %v415 = vunpack.c.h.b16 %v242
    %v416 = vunpack.c.l.b16 %v243
    %v417 = vunpack.c.h.b16 %v243
    %v418 = vunpack.c.l.b16 %v244
    %v419 = vunpack.c.h.b16 %v244
    %v420 = vunpack.c.l.b16 %v245
    %v421 = vunpack.c.h.b16 %v245
    %v422 = vunpack.c.l.b16 %v246
    %v423 = vunpack.c.h.b16 %v246
    %v424 = vunpack.c.l.b16 %v247
    %v425 = vunpack.c.h.b16 %v247
    %v426 = vunpack.c.l.b16 %v248
    %v427 = vunpack.c.h.b16 %v248
    %v428 = vunpack.c.l.b16 %v249
    %v429 = vunpack.c.h.b16 %v249
    %v430 = vunpack.c.l.b16 %v250
    %v431 = vunpack.c.h.b16 %v250
    %v432 = vunpack.c.l.b16 %v251
    %v433 = vunpack.c.h.b16 %v251
    %v434 = vunpack.c.l.b16 %v252
    %v435 = vunpack.c.h.b16 %v252
    %v436 = vunpack.c.l.b16 %v253
    %v437 = vunpack.c.h.b16 %v253
    %v438 = vunpack.c.l.b16 %v254
    %v439 = vunpack.c.h.b16 %v254
    %v440 = vunpack.c.l.b16 %v255
    %v441 = vunpack.c.h.b16 %v255
    %v442 = vunpack.c.l.b16 %v256
    %v443 = vunpack.c.h.b16 %v256
    %v444 = vunpack.c.l.b16 %v257
    %v445 = vunpack.c.h.b16 %v257
    %v446 = vunpack.c.l.b16 %v258
    %v447 = vunpack.c.h.b16 %v258
    %v448 = vunpack.c.l.b16 %v259
    %v449 = vunpack.c.h.b16 %v259
    %v450 = vunpack.c.l.b16 %v260
    %v451 = vunpack.c.h.b16 %v260
    %v452 = vunpack.c.l.b16 %v261
    %v453 = vunpack.c.h.b16 %v261
    %v454 = vunpack.c.l.b16 %v262
    %v455 = vunpack.c.h.b16 %v262
    %v456 = vunpack.c.l.b16 %v263
    %v457 = vunpack.c.h.b16 %v263
    %v458 = vunpack.c.l.b16 %v264
    %v459 = vunpack.c.h.b16 %v264
    %v460 = vunpack.c.l.b16 %v265
    %v461 = vunpack.c.h.b16 %v265
    %v462 = vunpack.c.l.b16 %v266
    %v463 = vunpack.c.h.b16 %v266
    %v464 = vunpack.c.l.b16 %v267
    %v465 = vunpack.c.h.b16 %v267
    %v466 = vunpack.c.l.b16 %v268
    %v467 = vunpack.c.h.b16 %v268
    %v468 = vunpack.c.l.b16 %v269
    %v469 = vunpack.c.h.b16 %v269
    %v470 = vunpack.c.l.b16 %v270
    %v471 = vunpack.c.h.b16 %v270
    %v472 = vunpack.c.l.b16 %v271
    %v473 = vunpack.c.h.b16 %v271
    %v474 = vunpack.c.l.b16 %v272
    %v475 = vunpack.c.h.b16 %v272
    %v476 = vpack.c.b16 %v352, %v348
    %v477 = vpack.c.b16 %v353, %v349
    %v478 = vpack.c.b16 %v354, %v350
    %v479 = vpack.c.b16 %v355, %v351
    %v480 = vpack.c.b16 %v360, %v356
    %v481 = vpack.c.b16 %v361, %v357
    %v482 = vpack.c.b16 %v362, %v358
    %v483 = vpack.c.b16 %v363, %v359
    %v484 = vpack.c.b16 %v368, %v364
    %v485 = vpack.c.b16 %v369, %v365
    %v486 = vpack.c.b16 %v370, %v366
    %v487 = vpack.c.b16 %v371, %v367
    %v488 = vpack.c.b16 %v376, %v372
    %v489 = vpack.c.b16 %v377, %v373
    %v490 = vpack.c.b16 %v378, %v374
    %v491 = vpack.c.b16 %v379, %v375
    %v492 = vpack.c.b16 %v384, %v380
    %v493 = vpack.c.b16 %v385, %v381
    %v494 = vpack.c.b16 %v386, %v382
    %v495 = vpack.c.b16 %v387, %v383
    %v496 = vpack.c.b16 %v392, %v388
    %v497 = vpack.c.b16 %v393, %v389
    %v498 = vpack.c.b16 %v394, %v390
    %v499 = vpack.c.b16 %v395, %v391
    %v500 = vpack.c.b16 %v400, %v396
    %v501 = vpack.c.b16 %v401, %v397
    %v502 = vpack.c.b16 %v402, %v398
    %v503 = vpack.c.b16 %v403, %v399
    %v504 = vpack.c.b16 %v408, %v404
    %v505 = vpack.c.b16 %v409, %v405
    %v506 = vpack.c.b16 %v410, %v406
    %v507 = vpack.c.b16 %v411, %v407
    %v508 = vpack.c.b16 %v416, %v412
    %v509 = vpack.c.b16 %v417, %v413
    %v510 = vpack.c.b16 %v418, %v414
    %v511 = vpack.c.b16 %v419, %v415
    %v512 = vpack.c.b16 %v424, %v420
    %v513 = vpack.c.b16 %v425, %v421
    %v514 = vpack.c.b16 %v426, %v422
    %v515 = vpack.c.b16 %v427, %v423
    %v516 = vpack.c.b16 %v432, %v428
    %v517 = vpack.c.b16 %v433, %v429
    %v518 = vpack.c.b16 %v434, %v430
    %v519 = vpack.c.b16 %v435, %v431
    %v520 = vpack.c.b16 %v440, %v436
    %v521 = vpack.c.b16 %v441, %v437
    %v522 = vpack.c.b16 %v442, %v438
    %v523 = vpack.c.b16 %v443, %v439
    %v524 = vpack.c.b16 %v448, %v444
    %v525 = vpack.c.b16 %v449, %v445
    %v526 = vpack.c.b16 %v450, %v446
    %v527 = vpack.c.b16 %v451, %v447
    %v528 = vpack.c.b16 %v456, %v452
    %v529 = vpack.c.b16 %v457, %v453
    %v530 = vpack.c.b16 %v458, %v454
    %v531 = vpack.c.b16 %v459, %v455
    %v532 = vpack.c.b16 %v464, %v460
    %v533 = vpack.c.b16 %v465, %v461
    %v534 = vpack.c.b16 %v466, %v462
    %v535 = vpack.c.b16 %v467, %v463
    %v536 = vpack.c.b16 %v472, %v468
    %v537 = vpack.c.b16 %v473, %v469
    %v538 = vpack.c.b16 %v474, %v470
    %v539 = vpack.c.b16 %v475, %v471
    %v605 = vlaneseq
    %v606 = vshrl.u32 %v605, 7
    %v607 = vsub.s32 0, %v606
    %v608 = vrot.slane %v273, %v607
    %v609 = vlaneseq
    %v610 = vshrl.u32 %v609, 7
    %v611 = vsub.s32 1, %v610
    %v612 = vrot.slane %v273, %v611
    %v613 = vlaneseq
    %v614 = vshrl.u32 %v613, 7
    %v615 = vsub.s32 2, %v614
    %v616 = vrot.slane %v273, %v615
    %v617 = vlaneseq
    %v618 = vshrl.u32 %v617, 7
    %v619 = vsub.s32 3, %v618
    %v620 = vrot.slane %v273, %v619
    %625 = vmatprep.subr.bf16.mxu0 %v477
    %626 = vmatpush1.bf16.msra.mxu0 %v476
    %627 = vmatprep.subr.bf16.mxu0 %v481
    %628 = vmatpush1.bf16.msra.mxu0 %v480
    %629 = vmatprep.subr.bf16.mxu0 %v485
    %630 = vmatpush1.bf16.msra.mxu0 %v484
    %631 = vmatprep.subr.bf16.mxu0 %v489
    %632 = vmatpush1.bf16.msra.mxu0 %v488
    %633 = vmatprep.subr.bf16.mxu0 %v493
    %634 = vmatpush1.bf16.msra.mxu0 %v492
    %635 = vmatprep.subr.bf16.mxu0 %v497
    %636 = vmatpush1.bf16.msra.mxu0 %v496
    %637 = vmatprep.subr.bf16.mxu0 %v501
    %638 = vmatpush1.bf16.msra.mxu0 %v500
    %639 = vmatprep.subr.bf16.mxu0 %v505
    %640 = vmatpush1.bf16.msra.mxu0 %v504
    %641 = vmatprep.subr.bf16.mxu0 %v509
    %642 = vmatpush1.bf16.msra.mxu0 %v508
    %643 = vmatprep.subr.bf16.mxu0 %v513
    %644 = vmatpush1.bf16.msra.mxu0 %v512
    %645 = vmatprep.subr.bf16.mxu0 %v517
    %646 = vmatpush1.bf16.msra.mxu0 %v516
    %647 = vmatprep.subr.bf16.mxu0 %v521
    %648 = vmatpush1.bf16.msra.mxu0 %v520
    %649 = vmatprep.subr.bf16.mxu0 %v525
    %650 = vmatpush1.bf16.msra.mxu0 %v524
    %651 = vmatprep.subr.bf16.mxu0 %v529
    %652 = vmatpush1.bf16.msra.mxu0 %v528
    %653 = vmatprep.subr.bf16.mxu0 %v533
    %654 = vmatpush1.bf16.msra.mxu0 %v532
    %655 = vmatprep.subr.bf16.mxu0 %v537
    %656 = vmatpush1.bf16.msra.mxu0 %v536
    %657 = vmatprep.mubr.bf16.mxu0 %v283
    %658 = vmatmul.mubr.bf16.gmra.mrb[0].mxu0 %v282
    %v659 = vpop.f32.mrb[0].mxu0
    %v660 = vadd.f32 %v608, %v659
    %v661 = vpop.f32.mrb[0].mxu0
    %v662 = vadd.f32 %v612, %v661
    %v663 = vpop.f32.mrb[0].mxu0
    %v664 = vpop.f32.mrb[0].mxu0
    %665 = vdwg.mxu0
    %666 = vmatprep.subr.bf16.mxu0 %v479
    %667 = vmatpush1.bf16.msra.mxu0 %v478
    %668 = vmatprep.subr.bf16.mxu0 %v483
    %669 = vmatpush1.bf16.msra.mxu0 %v482
    %670 = vmatprep.subr.bf16.mxu0 %v487
    %671 = vmatpush1.bf16.msra.mxu0 %v486
    %672 = vmatprep.subr.bf16.mxu0 %v491
    %673 = vmatpush1.bf16.msra.mxu0 %v490
    %674 = vmatprep.subr.bf16.mxu0 %v495
    %675 = vmatpush1.bf16.msra.mxu0 %v494
    %676 = vmatprep.subr.bf16.mxu0 %v499
    %677 = vmatpush1.bf16.msra.mxu0 %v498
    %678 = vmatprep.subr.bf16.mxu0 %v503
    %679 = vmatpush1.bf16.msra.mxu0 %v502
    %680 = vmatprep.subr.bf16.mxu0 %v507
    %681 = vmatpush1.bf16.msra.mxu0 %v506
    %682 = vmatprep.subr.bf16.mxu0 %v511
    %683 = vmatpush1.bf16.msra.mxu0 %v510
    %684 = vmatprep.subr.bf16.mxu0 %v515
    %685 = vmatpush1.bf16.msra.mxu0 %v514
    %686 = vmatprep.subr.bf16.mxu0 %v519
    %687 = vmatpush1.bf16.msra.mxu0 %v518
    %688 = vmatprep.subr.bf16.mxu0 %v523
    %689 = vmatpush1.bf16.msra.mxu0 %v522
    %690 = vmatprep.subr.bf16.mxu0 %v527
    %691 = vmatpush1.bf16.msra.mxu0 %v526
    %692 = vmatprep.subr.bf16.mxu0 %v531
    %693 = vmatpush1.bf16.msra.mxu0 %v530
    %694 = vmatprep.subr.bf16.mxu0 %v535
    %695 = vmatpush1.bf16.msra.mxu0 %v534
    %696 = vmatprep.subr.bf16.mxu0 %v539
    %697 = vmatpush1.bf16.msra.mxu0 %v538
    %698 = vmatprep.mubr.bf16.mxu0 %v283
    %699 = vmatmul.mubr.bf16.gmra.mrb[0].mxu0 %v282
    %v700 = vpop.f32.mrb[0].mxu0
    %v701 = vadd.f32 %v616, %v700
    %v702 = vpop.f32.mrb[0].mxu0
    %v703 = vadd.f32 %v620, %v702
    %v704 = vpop.f32.mrb[0].mxu0
    %v705 = vpop.f32.mrb[0].mxu0
    %706 = vdwg.mxu0
    %v707 = vxor.u32 %v660, 2147483648
    %v708 = vmul.f32 %v707, 1.442695
    %v709 = vpow.pop %v708
    %v710 = vadd.f32 %v709, 1.0
    %v711 = vrcp.pop %v710
    %v712 = vmul.f32 1.0, %v711
    %v713 = vxor.u32 %v662, 2147483648
    %v714 = vmul.f32 %v713, 1.442695
    %v715 = vpow.pop %v714
    %v716 = vadd.f32 %v715, 1.0
    %v717 = vrcp.pop %v716
    %v718 = vmul.f32 1.0, %v717
    %v719 = vtanh.pop %v701
    %v720 = vxor.u32 %v703, 2147483648
    %v721 = vmul.f32 %v720, 1.442695
    %v722 = vpow.pop %v721
    %v723 = vadd.f32 %v722, 1.0
    %v724 = vrcp.pop %v723
    %v725 = vmul.f32 1.0, %v724
    %v726 = vmul.f32 %v718, 0.0
    %v727 = vmul.f32 %v712, %v719
    %v728 = vadd.f32 %v726, %v727
    %v729 = vtanh.pop %v728
    %v730 = vmul.f32 %v725, %v729
    %731 = vst [vmem:[#allocation2] sm:$0x1] %v730
    %s732 = sld [smem:[#allocation4 + $0x1]]
    %p733 = scmp.gt.s32.totalorder %s732, 0
    %s734 = scalar_select %p733, %s732, 0
    %p735 = scmp.lt.s32.totalorder %s734, 27
    %s736 = scalar_select %p735, %s734, 27
    %s737 = scalar_lea.vmem [#allocation5], %s736
    %v738 = vld [vmem:[%s737] sm:$0x1]
    %v739 = vmax.f32 %v738, 0.0
    %v740 = vpack.c.bf16 %v739, %v739
    %v741 = vpack.c.bf16 %v730, %v730
    %742 = vmatprep.subr.bf16.mxu0 %v477
    %743 = vmatpush1.bf16.msra.mxu0 %v476
    %744 = vmatprep.subr.bf16.mxu0 %v481
    %745 = vmatpush1.bf16.msra.mxu0 %v480
    %746 = vmatprep.subr.bf16.mxu0 %v485
    %747 = vmatpush1.bf16.msra.mxu0 %v484
    %748 = vmatprep.subr.bf16.mxu0 %v489
    %749 = vmatpush1.bf16.msra.mxu0 %v488
    %750 = vmatprep.subr.bf16.mxu0 %v493
    %751 = vmatpush1.bf16.msra.mxu0 %v492
    %752 = vmatprep.subr.bf16.mxu0 %v497
    %753 = vmatpush1.bf16.msra.mxu0 %v496
    %754 = vmatprep.subr.bf16.mxu0 %v501
    %755 = vmatpush1.bf16.msra.mxu0 %v500
    %756 = vmatprep.subr.bf16.mxu0 %v505
    %757 = vmatpush1.bf16.msra.mxu0 %v504
    %758 = vmatprep.subr.bf16.mxu0 %v509
    %759 = vmatpush1.bf16.msra.mxu0 %v508
    %760 = vmatprep.subr.bf16.mxu0 %v513
    %761 = vmatpush1.bf16.msra.mxu0 %v512
    %762 = vmatprep.subr.bf16.mxu0 %v517
    %763 = vmatpush1.bf16.msra.mxu0 %v516
    %764 = vmatprep.subr.bf16.mxu0 %v521
    %765 = vmatpush1.bf16.msra.mxu0 %v520
    %766 = vmatprep.subr.bf16.mxu0 %v525
    %767 = vmatpush1.bf16.msra.mxu0 %v524
    %768 = vmatprep.subr.bf16.mxu0 %v529
    %769 = vmatpush1.bf16.msra.mxu0 %v528
    %770 = vmatprep.subr.bf16.mxu0 %v533
    %771 = vmatpush1.bf16.msra.mxu0 %v532
    %772 = vmatprep.subr.bf16.mxu0 %v537
    %773 = vmatpush1.bf16.msra.mxu0 %v536
    %774 = vmatprep.mubr.bf16.mxu0 %v741
    %775 = vmatmul.mubr.bf16.gmra.mrb[0].mxu0 %v740
    %v776 = vpop.f32.mrb[0].mxu0
    %v777 = vadd.f32 %v608, %v776
    %v778 = vpop.f32.mrb[0].mxu0
    %v779 = vadd.f32 %v612, %v778
    %v780 = vpop.f32.mrb[0].mxu0
    %v781 = vpop.f32.mrb[0].mxu0
    %782 = vdwg.mxu0
    %783 = vmatprep.subr.bf16.mxu0 %v479
    %784 = vmatpush1.bf16.msra.mxu0 %v478
    %785 = vmatprep.subr.bf16.mxu0 %v483
    %786 = vmatpush1.bf16.msra.mxu0 %v482
    %787 = vmatprep.subr.bf16.mxu0 %v487
    %788 = vmatpush1.bf16.msra.mxu0 %v486
    %789 = vmatprep.subr.bf16.mxu0 %v491
    %790 = vmatpush1.bf16.msra.mxu0 %v490
    %791 = vmatprep.subr.bf16.mxu0 %v495
    %792 = vmatpush1.bf16.msra.mxu0 %v494
    %793 = vmatprep.subr.bf16.mxu0 %v499
    %794 = vmatpush1.bf16.msra.mxu0 %v498
    %795 = vmatprep.subr.bf16.mxu0 %v503
    %796 = vmatpush1.bf16.msra.mxu0 %v502
    %797 = vmatprep.subr.bf16.mxu0 %v507
    %798 = vmatpush1.bf16.msra.mxu0 %v506
    %799 = vmatprep.subr.bf16.mxu0 %v511
    %800 = vmatpush1.bf16.msra.mxu0 %v510
    %801 = vmatprep.subr.bf16.mxu0 %v515
    %802 = vmatpush1.bf16.msra.mxu0 %v514
    %803 = vmatprep.subr.bf16.mxu0 %v519
    %804 = vmatpush1.bf16.msra.mxu0 %v518
    %805 = vmatprep.subr.bf16.mxu0 %v523
    %806 = vmatpush1.bf16.msra.mxu0 %v522
    %807 = vmatprep.subr.bf16.mxu0 %v527
    %808 = vmatpush1.bf16.msra.mxu0 %v526
    %809 = vmatprep.subr.bf16.mxu0 %v531
    %810 = vmatpush1.bf16.msra.mxu0 %v530
    %811 = vmatprep.subr.bf16.mxu0 %v535
    %812 = vmatpush1.bf16.msra.mxu0 %v534
    %813 = vmatprep.subr.bf16.mxu0 %v539
    %814 = vmatpush1.bf16.msra.mxu0 %v538
    %815 = vmatprep.mubr.bf16.mxu0 %v741
    %816 = vmatmul.mubr.bf16.gmra.mrb[0].mxu0 %v740
    %v817 = vpop.f32.mrb[0].mxu0
    %v818 = vadd.f32 %v616, %v817
    %v819 = vpop.f32.mrb[0].mxu0
    %v820 = vadd.f32 %v620, %v819
    %v821 = vpop.f32.mrb[0].mxu0
    %v822 = vpop.f32.mrb[0].mxu0
    %823 = vdwg.mxu0
    %v824 = vxor.u32 %v777, 2147483648
    %v825 = vmul.f32 %v824, 1.442695
    %v826 = vpow.pop %v825
    %v827 = vadd.f32 %v826, 1.0
    %v828 = vrcp.pop %v827
    %v829 = vmul.f32 1.0, %v828
    %v830 = vxor.u32 %v779, 2147483648
    %v831 = vmul.f32 %v830, 1.442695
    %v832 = vpow.pop %v831
    %v833 = vadd.f32 %v832, 1.0
    %v834 = vrcp.pop %v833
    %v835 = vmul.f32 1.0, %v834
    %v836 = vtanh.pop %v818
    %v837 = vxor.u32 %v820, 2147483648
    %v838 = vmul.f32 %v837, 1.442695
    %v839 = vpow.pop %v838
    %v840 = vadd.f32 %v839, 1.0
    %v841 = vrcp.pop %v840
    %v842 = vmul.f32 1.0, %v841
    %v843 = vmul.f32 %v835, %v728
    %v844 = vmul.f32 %v829, %v836
    %v845 = vadd.f32 %v843, %v844
    %v846 = vtanh.pop %v845
    %v847 = vmul.f32 %v842, %v846
    %848 = vst [vmem:[#allocation2 + $0x1] sm:$0x1] %v847
    %s849 = sld [smem:[#allocation4 + $0x2]]
    %p850 = scmp.gt.s32.totalorder %s849, 0
    %s851 = scalar_select %p850, %s849, 0
    %p852 = scmp.lt.s32.totalorder %s851, 27
    %s853 = scalar_select %p852, %s851, 27
    %s854 = scalar_lea.vmem [#allocation5], %s853
    %v855 = vld [vmem:[%s854] sm:$0x1]
    %v856 = vmax.f32 %v855, 0.0
    %v857 = vpack.c.bf16 %v856, %v856
    %v858 = vpack.c.bf16 %v847, %v847
    %859 = vmatprep.subr.bf16.mxu0 %v477
    %860 = vmatpush1.bf16.msra.mxu0 %v476
    %861 = vmatprep.subr.bf16.mxu0 %v481
    %862 = vmatpush1.bf16.msra.mxu0 %v480
    %863 = vmatprep.subr.bf16.mxu0 %v485
    %864 = vmatpush1.bf16.msra.mxu0 %v484
    %865 = vmatprep.subr.bf16.mxu0 %v489
    %866 = vmatpush1.bf16.msra.mxu0 %v488
    %867 = vmatprep.subr.bf16.mxu0 %v493
    %868 = vmatpush1.bf16.msra.mxu0 %v492
    %869 = vmatprep.subr.bf16.mxu0 %v497
    %870 = vmatpush1.bf16.msra.mxu0 %v496
    %871 = vmatprep.subr.bf16.mxu0 %v501
    %872 = vmatpush1.bf16.msra.mxu0 %v500
    %873 = vmatprep.subr.bf16.mxu0 %v505
    %874 = vmatpush1.bf16.msra.mxu0 %v504
    %875 = vmatprep.subr.bf16.mxu0 %v509
    %876 = vmatpush1.bf16.msra.mxu0 %v508
    %877 = vmatprep.subr.bf16.mxu0 %v513
    %878 = vmatpush1.bf16.msra.mxu0 %v512
    %879 = vmatprep.subr.bf16.mxu0 %v517
    %880 = vmatpush1.bf16.msra.mxu0 %v516
    %881 = vmatprep.subr.bf16.mxu0 %v521
    %882 = vmatpush1.bf16.msra.mxu0 %v520
    %883 = vmatprep.subr.bf16.mxu0 %v525
    %884 = vmatpush1.bf16.msra.mxu0 %v524
    %885 = vmatprep.subr.bf16.mxu0 %v529
    %886 = vmatpush1.bf16.msra.mxu0 %v528
    %887 = vmatprep.subr.bf16.mxu0 %v533
    %888 = vmatpush1.bf16.msra.mxu0 %v532
    %889 = vmatprep.subr.bf16.mxu0 %v537
    %890 = vmatpush1.bf16.msra.mxu0 %v536
    %891 = vmatprep.mubr.bf16.mxu0 %v858
    %892 = vmatmul.mubr.bf16.gmra.mrb[0].mxu0 %v857
    %v893 = vpop.f32.mrb[0].mxu0
    %v894 = vadd.f32 %v608, %v893
    %v895 = vpop.f32.mrb[0].mxu0
    %v896 = vadd.f32 %v612, %v895
    %v897 = vpop.f32.mrb[0].mxu0
    %v898 = vpop.f32.mrb[0].mxu0
    %899 = vdwg.mxu0
    %900 = vmatprep.subr.bf16.mxu0 %v479
    %901 = vmatpush1.bf16.msra.mxu0 %v478
    %902 = vmatprep.subr.bf16.mxu0 %v483
    %903 = vmatpush1.bf16.msra.mxu0 %v482
    %904 = vmatprep.subr.bf16.mxu0 %v487
    %905 = vmatpush1.bf16.msra.mxu0 %v486
    %906 = vmatprep.subr.bf16.mxu0 %v491
    %907 = vmatpush1.bf16.msra.mxu0 %v490
    %908 = vmatprep.subr.bf16.mxu0 %v495
    %909 = vmatpush1.bf16.msra.mxu0 %v494
    %910 = vmatprep.subr.bf16.mxu0 %v499
    %911 = vmatpush1.bf16.msra.mxu0 %v498
    %912 = vmatprep.subr.bf16.mxu0 %v503
    %913 = vmatpush1.bf16.msra.mxu0 %v502
    %914 = vmatprep.subr.bf16.mxu0 %v507
    %915 = vmatpush1.bf16.msra.mxu0 %v506
    %916 = vmatprep.subr.bf16.mxu0 %v511
    %917 = vmatpush1.bf16.msra.mxu0 %v510
    %918 = vmatprep.subr.bf16.mxu0 %v515
    %919 = vmatpush1.bf16.msra.mxu0 %v514
    %920 = vmatprep.subr.bf16.mxu0 %v519
    %921 = vmatpush1.bf16.msra.mxu0 %v518
    %922 = vmatprep.subr.bf16.mxu0 %v523
    %923 = vmatpush1.bf16.msra.mxu0 %v522
    %924 = vmatprep.subr.bf16.mxu0 %v527
    %925 = vmatpush1.bf16.msra.mxu0 %v526
    %926 = vmatprep.subr.bf16.mxu0 %v531
    %927 = vmatpush1.bf16.msra.mxu0 %v530
    %928 = vmatprep.subr.bf16.mxu0 %v535
    %929 = vmatpush1.bf16.msra.mxu0 %v534
    %930 = vmatprep.subr.bf16.mxu0 %v539
    %931 = vmatpush1.bf16.msra.mxu0 %v538
    %932 = vmatprep.mubr.bf16.mxu0 %v858
    %933 = vmatmul.mubr.bf16.gmra.mrb[0].mxu0 %v857
    %v934 = vpop.f32.mrb[0].mxu0
    %v935 = vadd.f32 %v616, %v934
    %v936 = vpop.f32.mrb[0].mxu0
    %v937 = vadd.f32 %v620, %v936
    %v938 = vpop.f32.mrb[0].mxu0
    %v939 = vpop.f32.mrb[0].mxu0
    %940 = vdwg.mxu0
    %v941 = vxor.u32 %v894, 2147483648
    %v942 = vmul.f32 %v941, 1.442695
    %v943 = vpow.pop %v942
    %v944 = vadd.f32 %v943, 1.0
    %v945 = vrcp.pop %v944
    %v946 = vmul.f32 1.0, %v945
    %v947 = vxor.u32 %v896, 2147483648
    %v948 = vmul.f32 %v947, 1.442695
    %v949 = vpow.pop %v948
    %v950 = vadd.f32 %v949, 1.0
    %v951 = vrcp.pop %v950
    %v952 = vmul.f32 1.0, %v951
    %v953 = vtanh.pop %v935
    %v954 = vxor.u32 %v937, 2147483648
    %v955 = vmul.f32 %v954, 1.442695
    %v956 = vpow.pop %v955
    %v957 = vadd.f32 %v956, 1.0
    %v958 = vrcp.pop %v957
    %v959 = vmul.f32 1.0, %v958
    %v960 = vmul.f32 %v952, %v845
    %v961 = vmul.f32 %v946, %v953
    %v962 = vadd.f32 %v960, %v961
    %v963 = vtanh.pop %v962
    %v964 = vmul.f32 %v959, %v963
    %965 = vst [vmem:[#allocation2 + $0x2] sm:$0x1] %v964
    %s966 = sld [smem:[#allocation4 + $0x3]]
    %p967 = scmp.gt.s32.totalorder %s966, 0
    %s968 = scalar_select %p967, %s966, 0
    %p969 = scmp.lt.s32.totalorder %s968, 27
    %s970 = scalar_select %p969, %s968, 27
    %s971 = scalar_lea.vmem [#allocation5], %s970
    %v972 = vld [vmem:[%s971] sm:$0x1]
    %v973 = vmax.f32 %v972, 0.0
    %v974 = vpack.c.bf16 %v973, %v973
    %v975 = vpack.c.bf16 %v964, %v964
    %976 = vmatprep.subr.bf16.mxu0 %v477
    %977 = vmatpush1.bf16.msra.mxu0 %v476
    %978 = vmatprep.subr.bf16.mxu0 %v481
    %979 = vmatpush1.bf16.msra.mxu0 %v480
    %980 = vmatprep.subr.bf16.mxu0 %v485
    %981 = vmatpush1.bf16.msra.mxu0 %v484
    %982 = vmatprep.subr.bf16.mxu0 %v489
    %983 = vmatpush1.bf16.msra.mxu0 %v488
    %984 = vmatprep.subr.bf16.mxu0 %v493
    %985 = vmatpush1.bf16.msra.mxu0 %v492
    %986 = vmatprep.subr.bf16.mxu0 %v497
    %987 = vmatpush1.bf16.msra.mxu0 %v496
    %988 = vmatprep.subr.bf16.mxu0 %v501
    %989 = vmatpush1.bf16.msra.mxu0 %v500
    %990 = vmatprep.subr.bf16.mxu0 %v505
    %991 = vmatpush1.bf16.msra.mxu0 %v504
    %992 = vmatprep.subr.bf16.mxu0 %v509
    %993 = vmatpush1.bf16.msra.mxu0 %v508
    %994 = vmatprep.subr.bf16.mxu0 %v513
    %995 = vmatpush1.bf16.msra.mxu0 %v512
    %996 = vmatprep.subr.bf16.mxu0 %v517
    %997 = vmatpush1.bf16.msra.mxu0 %v516
    %998 = vmatprep.subr.bf16.mxu0 %v521
    %999 = vmatpush1.bf16.msra.mxu0 %v520
    %1000 = vmatprep.subr.bf16.mxu0 %v525
    %1001 = vmatpush1.bf16.msra.mxu0 %v524
    %1002 = vmatprep.subr.bf16.mxu0 %v529
    %1003 = vmatpush1.bf16.msra.mxu0 %v528
    %1004 = vmatprep.subr.bf16.mxu0 %v533
    %1005 = vmatpush1.bf16.msra.mxu0 %v532
    %1006 = vmatprep.subr.bf16.mxu0 %v537
    %1007 = vmatpush1.bf16.msra.mxu0 %v536
    %1008 = vmatprep.mubr.bf16.mxu0 %v975
    %1009 = vmatmul.mubr.bf16.gmra.mrb[0].mxu0 %v974
    %v1010 = vpop.f32.mrb[0].mxu0
    %v1011 = vadd.f32 %v608, %v1010
    %v1012 = vpop.f32.mrb[0].mxu0
    %v1013 = vadd.f32 %v612, %v1012
    %v1014 = vpop.f32.mrb[0].mxu0
    %v1015 = vpop.f32.mrb[0].mxu0
    %1016 = vdwg.mxu0
    %1017 = vmatprep.subr.bf16.mxu0 %v479
    %1018 = vmatpush1.bf16.msra.mxu0 %v478
    %1019 = vmatprep.subr.bf16.mxu0 %v483
    %1020 = vmatpush1.bf16.msra.mxu0 %v482
    %1021 = vmatprep.subr.bf16.mxu0 %v487
    %1022 = vmatpush1.bf16.msra.mxu0 %v486
    %1023 = vmatprep.subr.bf16.mxu0 %v491
    %1024 = vmatpush1.bf16.msra.mxu0 %v490
    %1025 = vmatprep.subr.bf16.mxu0 %v495
    %1026 = vmatpush1.bf16.msra.mxu0 %v494
    %1027 = vmatprep.subr.bf16.mxu0 %v499
    %1028 = vmatpush1.bf16.msra.mxu0 %v498
    %1029 = vmatprep.subr.bf16.mxu0 %v503
    %1030 = vmatpush1.bf16.msra.mxu0 %v502
    %1031 = vmatprep.subr.bf16.mxu0 %v507
    %1032 = vmatpush1.bf16.msra.mxu0 %v506
    %1033 = vmatprep.subr.bf16.mxu0 %v511
    %1034 = vmatpush1.bf16.msra.mxu0 %v510
    %1035 = vmatprep.subr.bf16.mxu0 %v515
    %1036 = vmatpush1.bf16.msra.mxu0 %v514
    %1037 = vmatprep.subr.bf16.mxu0 %v519
    %1038 = vmatpush1.bf16.msra.mxu0 %v518
    %1039 = vmatprep.subr.bf16.mxu0 %v523
    %1040 = vmatpush1.bf16.msra.mxu0 %v522
    %1041 = vmatprep.subr.bf16.mxu0 %v527
    %1042 = vmatpush1.bf16.msra.mxu0 %v526
    %1043 = vmatprep.subr.bf16.mxu0 %v531
    %1044 = vmatpush1.bf16.msra.mxu0 %v530
    %1045 = vmatprep.subr.bf16.mxu0 %v535
    %1046 = vmatpush1.bf16.msra.mxu0 %v534
    %1047 = vmatprep.subr.bf16.mxu0 %v539
    %1048 = vmatpush1.bf16.msra.mxu0 %v538
    %1049 = vmatprep.mubr.bf16.mxu0 %v975
    %1050 = vmatmul.mubr.bf16.gmra.mrb[0].mxu0 %v974
    %v1051 = vpop.f32.mrb[0].mxu0
    %v1052 = vadd.f32 %v616, %v1051
    %v1053 = vpop.f32.mrb[0].mxu0
    %v1054 = vadd.f32 %v620, %v1053
    %v1055 = vpop.f32.mrb[0].mxu0
    %v1056 = vpop.f32.mrb[0].mxu0
    %1057 = vdwg.mxu0
    %v1058 = vxor.u32 %v1011, 2147483648
    %v1059 = vmul.f32 %v1058, 1.442695
    %v1060 = vpow.pop %v1059
    %v1061 = vadd.f32 %v1060, 1.0
    %v1062 = vrcp.pop %v1061
    %v1063 = vmul.f32 1.0, %v1062
    %v1064 = vxor.u32 %v1013, 2147483648
    %v1065 = vmul.f32 %v1064, 1.442695
    %v1066 = vpow.pop %v1065
    %v1067 = vadd.f32 %v1066, 1.0
    %v1068 = vrcp.pop %v1067
    %v1069 = vmul.f32 1.0, %v1068
    %v1070 = vtanh.pop %v1052
    %v1071 = vxor.u32 %v1054, 2147483648
    %v1072 = vmul.f32 %v1071, 1.442695
    %v1073 = vpow.pop %v1072
    %v1074 = vadd.f32 %v1073, 1.0
    %v1075 = vrcp.pop %v1074
    %v1076 = vmul.f32 1.0, %v1075
    %v1077 = vmul.f32 %v1069, %v962
    %v1078 = vmul.f32 %v1063, %v1070
    %v1079 = vadd.f32 %v1077, %v1078
    %v1080 = vtanh.pop %v1079
    %v1081 = vmul.f32 %v1076, %v1080
    %1082 = vst [vmem:[#allocation2 + $0x3] sm:$0x1] %v1081
    %s1083 = sld [smem:[#allocation4 + $0x4]]
    %p1084 = scmp.gt.s32.totalorder %s1083, 0
    %s1085 = scalar_select %p1084, %s1083, 0
    %p1086 = scmp.lt.s32.totalorder %s1085, 27
    %s1087 = scalar_select %p1086, %s1085, 27
    %s1088 = scalar_lea.vmem [#allocation5], %s1087
    %v1089 = vld [vmem:[%s1088] sm:$0x1]
    %v1090 = vmax.f32 %v1089, 0.0
    %v1091 = vpack.c.bf16 %v1090, %v1090
    %v1092 = vpack.c.bf16 %v1081, %v1081
    %1093 = vmatprep.subr.bf16.mxu0 %v477
    %1094 = vmatpush1.bf16.msra.mxu0 %v476
    %1095 = vmatprep.subr.bf16.mxu0 %v481
    %1096 = vmatpush1.bf16.msra.mxu0 %v480
    %1097 = vmatprep.subr.bf16.mxu0 %v485
    %1098 = vmatpush1.bf16.msra.mxu0 %v484
    %1099 = vmatprep.subr.bf16.mxu0 %v489
    %1100 = vmatpush1.bf16.msra.mxu0 %v488
    %1101 = vmatprep.subr.bf16.mxu0 %v493
    %1102 = vmatpush1.bf16.msra.mxu0 %v492
    %1103 = vmatprep.subr.bf16.mxu0 %v497
    %1104 = vmatpush1.bf16.msra.mxu0 %v496
    %1105 = vmatprep.subr.bf16.mxu0 %v501
    %1106 = vmatpush1.bf16.msra.mxu0 %v500
    %1107 = vmatprep.subr.bf16.mxu0 %v505
    %1108 = vmatpush1.bf16.msra.mxu0 %v504
    %1109 = vmatprep.subr.bf16.mxu0 %v509
    %1110 = vmatpush1.bf16.msra.mxu0 %v508
    %1111 = vmatprep.subr.bf16.mxu0 %v513
    %1112 = vmatpush1.bf16.msra.mxu0 %v512
    %1113 = vmatprep.subr.bf16.mxu0 %v517
    %1114 = vmatpush1.bf16.msra.mxu0 %v516
    %1115 = vmatprep.subr.bf16.mxu0 %v521
    %1116 = vmatpush1.bf16.msra.mxu0 %v520
    %1117 = vmatprep.subr.bf16.mxu0 %v525
    %1118 = vmatpush1.bf16.msra.mxu0 %v524
    %1119 = vmatprep.subr.bf16.mxu0 %v529
    %1120 = vmatpush1.bf16.msra.mxu0 %v528
    %1121 = vmatprep.subr.bf16.mxu0 %v533
    %1122 = vmatpush1.bf16.msra.mxu0 %v532
    %1123 = vmatprep.subr.bf16.mxu0 %v537
    %1124 = vmatpush1.bf16.msra.mxu0 %v536
    %1125 = vmatprep.mubr.bf16.mxu0 %v1092
    %1126 = vmatmul.mubr.bf16.gmra.mrb[0].mxu0 %v1091
    %v1127 = vpop.f32.mrb[0].mxu0
    %v1128 = vadd.f32 %v608, %v1127
    %v1129 = vpop.f32.mrb[0].mxu0
    %v1130 = vadd.f32 %v612, %v1129
    %v1131 = vpop.f32.mrb[0].mxu0
    %v1132 = vpop.f32.mrb[0].mxu0
    %1133 = vdwg.mxu0
    %1134 = vmatprep.subr.bf16.mxu0 %v479
    %1135 = vmatpush1.bf16.msra.mxu0 %v478
    %1136 = vmatprep.subr.bf16.mxu0 %v483
    %1137 = vmatpush1.bf16.msra.mxu0 %v482
    %1138 = vmatprep.subr.bf16.mxu0 %v487
    %1139 = vmatpush1.bf16.msra.mxu0 %v486
    %1140 = vmatprep.subr.bf16.mxu0 %v491
    %1141 = vmatpush1.bf16.msra.mxu0 %v490
    %1142 = vmatprep.subr.bf16.mxu0 %v495
    %1143 = vmatpush1.bf16.msra.mxu0 %v494
    %1144 = vmatprep.subr.bf16.mxu0 %v499
    %1145 = vmatpush1.bf16.msra.mxu0 %v498
    %1146 = vmatprep.subr.bf16.mxu0 %v503
    %1147 = vmatpush1.bf16.msra.mxu0 %v502
    %1148 = vmatprep.subr.bf16.mxu0 %v507
    %1149 = vmatpush1.bf16.msra.mxu0 %v506
    %1150 = vmatprep.subr.bf16.mxu0 %v511
    %1151 = vmatpush1.bf16.msra.mxu0 %v510
    %1152 = vmatprep.subr.bf16.mxu0 %v515
    %1153 = vmatpush1.bf16.msra.mxu0 %v514
    %1154 = vmatprep.subr.bf16.mxu0 %v519
    %1155 = vmatpush1.bf16.msra.mxu0 %v518
    %1156 = vmatprep.subr.bf16.mxu0 %v523
    %1157 = vmatpush1.bf16.msra.mxu0 %v522
    %1158 = vmatprep.subr.bf16.mxu0 %v527
    %1159 = vmatpush1.bf16.msra.mxu0 %v526
    %1160 = vmatprep.subr.bf16.mxu0 %v531
    %1161 = vmatpush1.bf16.msra.mxu0 %v530
    %1162 = vmatprep.subr.bf16.mxu0 %v535
    %1163 = vmatpush1.bf16.msra.mxu0 %v534
    %1164 = vmatprep.subr.bf16.mxu0 %v539
    %1165 = vmatpush1.bf16.msra.mxu0 %v538
    %1166 = vmatprep.mubr.bf16.mxu0 %v1092
    %1167 = vmatmul.mubr.bf16.gmra.mrb[0].mxu0 %v1091
    %v1168 = vpop.f32.mrb[0].mxu0
    %v1169 = vadd.f32 %v616, %v1168
    %v1170 = vpop.f32.mrb[0].mxu0
    %v1171 = vadd.f32 %v620, %v1170
    %v1172 = vpop.f32.mrb[0].mxu0
    %v1173 = vpop.f32.mrb[0].mxu0
    %1174 = vdwg.mxu0
    %v1175 = vxor.u32 %v1128, 2147483648
    %v1176 = vmul.f32 %v1175, 1.442695
    %v1177 = vpow.pop %v1176
    %v1178 = vadd.f32 %v1177, 1.0
    %v1179 = vrcp.pop %v1178
    %v1180 = vmul.f32 1.0, %v1179
    %v1181 = vxor.u32 %v1130, 2147483648
    %v1182 = vmul.f32 %v1181, 1.442695
    %v1183 = vpow.pop %v1182
    %v1184 = vadd.f32 %v1183, 1.0
    %v1185 = vrcp.pop %v1184
    %v1186 = vmul.f32 1.0, %v1185
    %v1187 = vtanh.pop %v1169
    %v1188 = vxor.u32 %v1171, 2147483648
    %v1189 = vmul.f32 %v1188, 1.442695
    %v1190 = vpow.pop %v1189
    %v1191 = vadd.f32 %v1190, 1.0
    %v1192 = vrcp.pop %v1191
    %v1193 = vmul.f32 1.0, %v1192
    %v1194 = vmul.f32 %v1186, %v1079
    %v1195 = vmul.f32 %v1180, %v1187
    %v1196 = vadd.f32 %v1194, %v1195
    %v1197 = vtanh.pop %v1196
    %v1198 = vmul.f32 %v1193, %v1197
    %1199 = vst [vmem:[#allocation2 + $0x4] sm:$0x1] %v1198
    %s1200 = sld [smem:[#allocation4 + $0x5]]
    %p1201 = scmp.gt.s32.totalorder %s1200, 0
    %s1202 = scalar_select %p1201, %s1200, 0
    %p1203 = scmp.lt.s32.totalorder %s1202, 27
    %s1204 = scalar_select %p1203, %s1202, 27
    %s1205 = scalar_lea.vmem [#allocation5], %s1204
    %v1206 = vld [vmem:[%s1205] sm:$0x1]
    %v1207 = vmax.f32 %v1206, 0.0
    %v1208 = vpack.c.bf16 %v1207, %v1207
    %v1209 = vpack.c.bf16 %v1198, %v1198
    %1210 = vmatprep.subr.bf16.mxu0 %v477
    %1211 = vmatpush1.bf16.msra.mxu0 %v476
    %1212 = vmatprep.subr.bf16.mxu0 %v481
    %1213 = vmatpush1.bf16.msra.mxu0 %v480
    %1214 = vmatprep.subr.bf16.mxu0 %v485
    %1215 = vmatpush1.bf16.msra.mxu0 %v484
    %1216 = vmatprep.subr.bf16.mxu0 %v489
    %1217 = vmatpush1.bf16.msra.mxu0 %v488
    %1218 = vmatprep.subr.bf16.mxu0 %v493
    %1219 = vmatpush1.bf16.msra.mxu0 %v492
    %1220 = vmatprep.subr.bf16.mxu0 %v497
    %1221 = vmatpush1.bf16.msra.mxu0 %v496
    %1222 = vmatprep.subr.bf16.mxu0 %v501
    %1223 = vmatpush1.bf16.msra.mxu0 %v500
    %1224 = vmatprep.subr.bf16.mxu0 %v505
    %1225 = vmatpush1.bf16.msra.mxu0 %v504
    %1226 = vmatprep.subr.bf16.mxu0 %v509
    %1227 = vmatpush1.bf16.msra.mxu0 %v508
    %1228 = vmatprep.subr.bf16.mxu0 %v513
    %1229 = vmatpush1.bf16.msra.mxu0 %v512
    %1230 = vmatprep.subr.bf16.mxu0 %v517
    %1231 = vmatpush1.bf16.msra.mxu0 %v516
    %1232 = vmatprep.subr.bf16.mxu0 %v521
    %1233 = vmatpush1.bf16.msra.mxu0 %v520
    %1234 = vmatprep.subr.bf16.mxu0 %v525
    %1235 = vmatpush1.bf16.msra.mxu0 %v524
    %1236 = vmatprep.subr.bf16.mxu0 %v529
    %1237 = vmatpush1.bf16.msra.mxu0 %v528
    %1238 = vmatprep.subr.bf16.mxu0 %v533
    %1239 = vmatpush1.bf16.msra.mxu0 %v532
    %1240 = vmatprep.subr.bf16.mxu0 %v537
    %1241 = vmatpush1.bf16.msra.mxu0 %v536
    %1242 = vmatprep.mubr.bf16.mxu0 %v1209
    %1243 = vmatmul.mubr.bf16.gmra.mrb[0].mxu0 %v1208
    %v1244 = vpop.f32.mrb[0].mxu0
    %v1245 = vadd.f32 %v608, %v1244
    %v1246 = vpop.f32.mrb[0].mxu0
    %v1247 = vadd.f32 %v612, %v1246
    %v1248 = vpop.f32.mrb[0].mxu0
    %v1249 = vpop.f32.mrb[0].mxu0
    %1250 = vdwg.mxu0
    %1251 = vmatprep.subr.bf16.mxu0 %v479
    %1252 = vmatpush1.bf16.msra.mxu0 %v478
    %1253 = vmatprep.subr.bf16.mxu0 %v483
    %1254 = vmatpush1.bf16.msra.mxu0 %v482
    %1255 = vmatprep.subr.bf16.mxu0 %v487
    %1256 = vmatpush1.bf16.msra.mxu0 %v486
    %1257 = vmatprep.subr.bf16.mxu0 %v491
    %1258 = vmatpush1.bf16.msra.mxu0 %v490
    %1259 = vmatprep.subr.bf16.mxu0 %v495
    %1260 = vmatpush1.bf16.msra.mxu0 %v494
    %1261 = vmatprep.subr.bf16.mxu0 %v499
    %1262 = vmatpush1.bf16.msra.mxu0 %v498
    %1263 = vmatprep.subr.bf16.mxu0 %v503
    %1264 = vmatpush1.bf16.msra.mxu0 %v502
    %1265 = vmatprep.subr.bf16.mxu0 %v507
    %1266 = vmatpush1.bf16.msra.mxu0 %v506
    %1267 = vmatprep.subr.bf16.mxu0 %v511
    %1268 = vmatpush1.bf16.msra.mxu0 %v510
    %1269 = vmatprep.subr.bf16.mxu0 %v515
    %1270 = vmatpush1.bf16.msra.mxu0 %v514
    %1271 = vmatprep.subr.bf16.mxu0 %v519
    %1272 = vmatpush1.bf16.msra.mxu0 %v518
    %1273 = vmatprep.subr.bf16.mxu0 %v523
    %1274 = vmatpush1.bf16.msra.mxu0 %v522
    %1275 = vmatprep.subr.bf16.mxu0 %v527
    %1276 = vmatpush1.bf16.msra.mxu0 %v526
    %1277 = vmatprep.subr.bf16.mxu0 %v531
    %1278 = vmatpush1.bf16.msra.mxu0 %v530
    %1279 = vmatprep.subr.bf16.mxu0 %v535
    %1280 = vmatpush1.bf16.msra.mxu0 %v534
    %1281 = vmatprep.subr.bf16.mxu0 %v539
    %1282 = vmatpush1.bf16.msra.mxu0 %v538
    %1283 = vmatprep.mubr.bf16.mxu0 %v1209
    %1284 = vmatmul.mubr.bf16.gmra.mrb[0].mxu0 %v1208
    %v1285 = vpop.f32.mrb[0].mxu0
    %v1286 = vadd.f32 %v616, %v1285
    %v1287 = vpop.f32.mrb[0].mxu0
    %v1288 = vadd.f32 %v620, %v1287
    %v1289 = vpop.f32.mrb[0].mxu0
    %v1290 = vpop.f32.mrb[0].mxu0
    %1291 = vdwg.mxu0
    %v1292 = vxor.u32 %v1245, 2147483648
    %v1293 = vmul.f32 %v1292, 1.442695
    %v1294 = vpow.pop %v1293
    %v1295 = vadd.f32 %v1294, 1.0
    %v1296 = vrcp.pop %v1295
    %v1297 = vmul.f32 1.0, %v1296
    %v1298 = vxor.u32 %v1247, 2147483648
    %v1299 = vmul.f32 %v1298, 1.442695
    %v1300 = vpow.pop %v1299
    %v1301 = vadd.f32 %v1300, 1.0
    %v1302 = vrcp.pop %v1301
    %v1303 = vmul.f32 1.0, %v1302
    %v1304 = vtanh.pop %v1286
    %v1305 = vxor.u32 %v1288, 2147483648
    %v1306 = vmul.f32 %v1305, 1.442695
    %v1307 = vpow.pop %v1306
    %v1308 = vadd.f32 %v1307, 1.0
    %v1309 = vrcp.pop %v1308
    %v1310 = vmul.f32 1.0, %v1309
    %v1311 = vmul.f32 %v1303, %v1196
    %v1312 = vmul.f32 %v1297, %v1304
    %v1313 = vadd.f32 %v1311, %v1312
    %v1314 = vtanh.pop %v1313
    %v1315 = vmul.f32 %v1310, %v1314
    %1316 = vst [vmem:[#allocation2 + $0x5] sm:$0x1] %v1315
    %s1317 = sld [smem:[#allocation4 + $0x6]]
    %p1318 = scmp.gt.s32.totalorder %s1317, 0
    %s1319 = scalar_select %p1318, %s1317, 0
    %p1320 = scmp.lt.s32.totalorder %s1319, 27
    %s1321 = scalar_select %p1320, %s1319, 27
    %s1322 = scalar_lea.vmem [#allocation5], %s1321
    %v1323 = vld [vmem:[%s1322] sm:$0x1]
    %v1324 = vmax.f32 %v1323, 0.0
    %v1325 = vpack.c.bf16 %v1324, %v1324
    %v1326 = vpack.c.bf16 %v1315, %v1315
    %1327 = vmatprep.subr.bf16.mxu0 %v477
    %1328 = vmatpush1.bf16.msra.mxu0 %v476
    %1329 = vmatprep.subr.bf16.mxu0 %v481
    %1330 = vmatpush1.bf16.msra.mxu0 %v480
    %1331 = vmatprep.subr.bf16.mxu0 %v485
    %1332 = vmatpush1.bf16.msra.mxu0 %v484
    %1333 = vmatprep.subr.bf16.mxu0 %v489
    %1334 = vmatpush1.bf16.msra.mxu0 %v488
    %1335 = vmatprep.subr.bf16.mxu0 %v493
    %1336 = vmatpush1.bf16.msra.mxu0 %v492
    %1337 = vmatprep.subr.bf16.mxu0 %v497
    %1338 = vmatpush1.bf16.msra.mxu0 %v496
    %1339 = vmatprep.subr.bf16.mxu0 %v501
    %1340 = vmatpush1.bf16.msra.mxu0 %v500
    %1341 = vmatprep.subr.bf16.mxu0 %v505
    %1342 = vmatpush1.bf16.msra.mxu0 %v504
    %1343 = vmatprep.subr.bf16.mxu0 %v509
    %1344 = vmatpush1.bf16.msra.mxu0 %v508
    %1345 = vmatprep.subr.bf16.mxu0 %v513
    %1346 = vmatpush1.bf16.msra.mxu0 %v512
    %1347 = vmatprep.subr.bf16.mxu0 %v517
    %1348 = vmatpush1.bf16.msra.mxu0 %v516
    %1349 = vmatprep.subr.bf16.mxu0 %v521
    %1350 = vmatpush1.bf16.msra.mxu0 %v520
    %1351 = vmatprep.subr.bf16.mxu0 %v525
    %1352 = vmatpush1.bf16.msra.mxu0 %v524
    %1353 = vmatprep.subr.bf16.mxu0 %v529
    %1354 = vmatpush1.bf16.msra.mxu0 %v528
    %1355 = vmatprep.subr.bf16.mxu0 %v533
    %1356 = vmatpush1.bf16.msra.mxu0 %v532
    %1357 = vmatprep.subr.bf16.mxu0 %v537
    %1358 = vmatpush1.bf16.msra.mxu0 %v536
    %1359 = vmatprep.mubr.bf16.mxu0 %v1326
    %1360 = vmatmul.mubr.bf16.gmra.mrb[0].mxu0 %v1325
    %v1361 = vpop.f32.mrb[0].mxu0
    %v1362 = vadd.f32 %v608, %v1361
    %v1363 = vpop.f32.mrb[0].mxu0
    %v1364 = vadd.f32 %v612, %v1363
    %v1365 = vpop.f32.mrb[0].mxu0
    %v1366 = vpop.f32.mrb[0].mxu0
    %1367 = vdwg.mxu0
    %1368 = vmatprep.subr.bf16.mxu0 %v479
    %1369 = vmatpush1.bf16.msra.mxu0 %v478
    %1370 = vmatprep.subr.bf16.mxu0 %v483
    %1371 = vmatpush1.bf16.msra.mxu0 %v482
    %1372 = vmatprep.subr.bf16.mxu0 %v487
    %1373 = vmatpush1.bf16.msra.mxu0 %v486
    %1374 = vmatprep.subr.bf16.mxu0 %v491
    %1375 = vmatpush1.bf16.msra.mxu0 %v490
    %1376 = vmatprep.subr.bf16.mxu0 %v495
    %1377 = vmatpush1.bf16.msra.mxu0 %v494
    %1378 = vmatprep.subr.bf16.mxu0 %v499
    %1379 = vmatpush1.bf16.msra.mxu0 %v498
    %1380 = vmatprep.subr.bf16.mxu0 %v503
    %1381 = vmatpush1.bf16.msra.mxu0 %v502
    %1382 = vmatprep.subr.bf16.mxu0 %v507
    %1383 = vmatpush1.bf16.msra.mxu0 %v506
    %1384 = vmatprep.subr.bf16.mxu0 %v511
    %1385 = vmatpush1.bf16.msra.mxu0 %v510
    %1386 = vmatprep.subr.bf16.mxu0 %v515
    %1387 = vmatpush1.bf16.msra.mxu0 %v514
    %1388 = vmatprep.subr.bf16.mxu0 %v519
    %1389 = vmatpush1.bf16.msra.mxu0 %v518
    %1390 = vmatprep.subr.bf16.mxu0 %v523
    %1391 = vmatpush1.bf16.msra.mxu0 %v522
    %1392 = vmatprep.subr.bf16.mxu0 %v527
    %1393 = vmatpush1.bf16.msra.mxu0 %v526
    %1394 = vmatprep.subr.bf16.mxu0 %v531
    %1395 = vmatpush1.bf16.msra.mxu0 %v530
    %1396 = vmatprep.subr.bf16.mxu0 %v535
    %1397 = vmatpush1.bf16.msra.mxu0 %v534
    %1398 = vmatprep.subr.bf16.mxu0 %v539
    %1399 = vmatpush1.bf16.msra.mxu0 %v538
    %1400 = vmatprep.mubr.bf16.mxu0 %v1326
    %1401 = vmatmul.mubr.bf16.gmra.mrb[0].mxu0 %v1325
    %v1402 = vpop.f32.mrb[0].mxu0
    %v1403 = vadd.f32 %v616, %v1402
    %v1404 = vpop.f32.mrb[0].mxu0
    %v1405 = vadd.f32 %v620, %v1404
    %v1406 = vpop.f32.mrb[0].mxu0
    %v1407 = vpop.f32.mrb[0].mxu0
    %1408 = vdwg.mxu0
    %v1409 = vxor.u32 %v1362, 2147483648
    %v1410 = vmul.f32 %v1409, 1.442695
    %v1411 = vpow.pop %v1410
    %v1412 = vadd.f32 %v1411, 1.0
    %v1413 = vrcp.pop %v1412
    %v1414 = vmul.f32 1.0, %v1413
    %v1415 = vxor.u32 %v1364, 2147483648
    %v1416 = vmul.f32 %v1415, 1.442695
    %v1417 = vpow.pop %v1416
    %v1418 = vadd.f32 %v1417, 1.0
    %v1419 = vrcp.pop %v1418
    %v1420 = vmul.f32 1.0, %v1419
    %v1421 = vtanh.pop %v1403
    %v1422 = vxor.u32 %v1405, 2147483648
    %v1423 = vmul.f32 %v1422, 1.442695
    %v1424 = vpow.pop %v1423
    %v1425 = vadd.f32 %v1424, 1.0
    %v1426 = vrcp.pop %v1425
    %v1427 = vmul.f32 1.0, %v1426
    %v1428 = vmul.f32 %v1420, %v1313
    %v1429 = vmul.f32 %v1414, %v1421
    %v1430 = vadd.f32 %v1428, %v1429
    %v1431 = vtanh.pop %v1430
    %v1432 = vmul.f32 %v1427, %v1431
    %1433 = vst [vmem:[#allocation2 + $0x6] sm:$0x1] %v1432
    %s1434 = sld [smem:[#allocation4 + $0x7]]
    %p1435 = scmp.gt.s32.totalorder %s1434, 0
    %s1436 = scalar_select %p1435, %s1434, 0
    %p1437 = scmp.lt.s32.totalorder %s1436, 27
    %s1438 = scalar_select %p1437, %s1436, 27
    %s1439 = scalar_lea.vmem [#allocation5], %s1438
    %v1440 = vld [vmem:[%s1439] sm:$0x1]
    %v1441 = vmax.f32 %v1440, 0.0
    %v1442 = vpack.c.bf16 %v1441, %v1441
    %v1443 = vpack.c.bf16 %v1432, %v1432
    %1444 = vmatprep.subr.bf16.mxu0 %v477
    %1445 = vmatpush1.bf16.msra.mxu0 %v476
    %1446 = vmatprep.subr.bf16.mxu0 %v481
    %1447 = vmatpush1.bf16.msra.mxu0 %v480
    %1448 = vmatprep.subr.bf16.mxu0 %v485
    %1449 = vmatpush1.bf16.msra.mxu0 %v484
    %1450 = vmatprep.subr.bf16.mxu0 %v489
    %1451 = vmatpush1.bf16.msra.mxu0 %v488
    %1452 = vmatprep.subr.bf16.mxu0 %v493
    %1453 = vmatpush1.bf16.msra.mxu0 %v492
    %1454 = vmatprep.subr.bf16.mxu0 %v497
    %1455 = vmatpush1.bf16.msra.mxu0 %v496
    %1456 = vmatprep.subr.bf16.mxu0 %v501
    %1457 = vmatpush1.bf16.msra.mxu0 %v500
    %1458 = vmatprep.subr.bf16.mxu0 %v505
    %1459 = vmatpush1.bf16.msra.mxu0 %v504
    %1460 = vmatprep.subr.bf16.mxu0 %v509
    %1461 = vmatpush1.bf16.msra.mxu0 %v508
    %1462 = vmatprep.subr.bf16.mxu0 %v513
    %1463 = vmatpush1.bf16.msra.mxu0 %v512
    %1464 = vmatprep.subr.bf16.mxu0 %v517
    %1465 = vmatpush1.bf16.msra.mxu0 %v516
    %1466 = vmatprep.subr.bf16.mxu0 %v521
    %1467 = vmatpush1.bf16.msra.mxu0 %v520
    %1468 = vmatprep.subr.bf16.mxu0 %v525
    %1469 = vmatpush1.bf16.msra.mxu0 %v524
    %1470 = vmatprep.subr.bf16.mxu0 %v529
    %1471 = vmatpush1.bf16.msra.mxu0 %v528
    %1472 = vmatprep.subr.bf16.mxu0 %v533
    %1473 = vmatpush1.bf16.msra.mxu0 %v532
    %1474 = vmatprep.subr.bf16.mxu0 %v537
    %1475 = vmatpush1.bf16.msra.mxu0 %v536
    %1476 = vmatprep.mubr.bf16.mxu0 %v1443
    %1477 = vmatmul.mubr.bf16.gmra.mrb[0].mxu0 %v1442
    %v1478 = vpop.f32.mrb[0].mxu0
    %v1479 = vadd.f32 %v608, %v1478
    %v1480 = vpop.f32.mrb[0].mxu0
    %v1481 = vadd.f32 %v612, %v1480
    %v1482 = vpop.f32.mrb[0].mxu0
    %v1483 = vpop.f32.mrb[0].mxu0
    %1484 = vdwg.mxu0
    %1485 = vmatprep.subr.bf16.mxu0 %v479
    %1486 = vmatpush1.bf16.msra.mxu0 %v478
    %1487 = vmatprep.subr.bf16.mxu0 %v483
    %1488 = vmatpush1.bf16.msra.mxu0 %v482
    %1489 = vmatprep.subr.bf16.mxu0 %v487
    %1490 = vmatpush1.bf16.msra.mxu0 %v486
    %1491 = vmatprep.subr.bf16.mxu0 %v491
    %1492 = vmatpush1.bf16.msra.mxu0 %v490
    %1493 = vmatprep.subr.bf16.mxu0 %v495
    %1494 = vmatpush1.bf16.msra.mxu0 %v494
    %1495 = vmatprep.subr.bf16.mxu0 %v499
    %1496 = vmatpush1.bf16.msra.mxu0 %v498
    %1497 = vmatprep.subr.bf16.mxu0 %v503
    %1498 = vmatpush1.bf16.msra.mxu0 %v502
    %1499 = vmatprep.subr.bf16.mxu0 %v507
    %1500 = vmatpush1.bf16.msra.mxu0 %v506
    %1501 = vmatprep.subr.bf16.mxu0 %v511
    %1502 = vmatpush1.bf16.msra.mxu0 %v510
    %1503 = vmatprep.subr.bf16.mxu0 %v515
    %1504 = vmatpush1.bf16.msra.mxu0 %v514
    %1505 = vmatprep.subr.bf16.mxu0 %v519
    %1506 = vmatpush1.bf16.msra.mxu0 %v518
    %1507 = vmatprep.subr.bf16.mxu0 %v523
    %1508 = vmatpush1.bf16.msra.mxu0 %v522
    %1509 = vmatprep.subr.bf16.mxu0 %v527
    %1510 = vmatpush1.bf16.msra.mxu0 %v526
    %1511 = vmatprep.subr.bf16.mxu0 %v531
    %1512 = vmatpush1.bf16.msra.mxu0 %v530
    %1513 = vmatprep.subr.bf16.mxu0 %v535
    %1514 = vmatpush1.bf16.msra.mxu0 %v534
    %1515 = vmatprep.subr.bf16.mxu0 %v539
    %1516 = vmatpush1.bf16.msra.mxu0 %v538
    %1517 = vmatprep.mubr.bf16.mxu0 %v1443
    %1518 = vmatmul.mubr.bf16.gmra.mrb[0].mxu0 %v1442
    %v1519 = vpop.f32.mrb[0].mxu0
    %v1520 = vadd.f32 %v616, %v1519
    %v1521 = vpop.f32.mrb[0].mxu0
    %v1522 = vadd.f32 %v620, %v1521
    %v1523 = vpop.f32.mrb[0].mxu0
    %v1524 = vpop.f32.mrb[0].mxu0
    %1525 = vdwg.mxu0
    %v1526 = vxor.u32 %v1479, 2147483648
    %v1527 = vmul.f32 %v1526, 1.442695
    %v1528 = vpow.pop %v1527
    %v1529 = vadd.f32 %v1528, 1.0
    %v1530 = vrcp.pop %v1529
    %v1531 = vmul.f32 1.0, %v1530
    %v1532 = vxor.u32 %v1481, 2147483648
    %v1533 = vmul.f32 %v1532, 1.442695
    %v1534 = vpow.pop %v1533
    %v1535 = vadd.f32 %v1534, 1.0
    %v1536 = vrcp.pop %v1535
    %v1537 = vmul.f32 1.0, %v1536
    %v1538 = vtanh.pop %v1520
    %v1539 = vxor.u32 %v1522, 2147483648
    %v1540 = vmul.f32 %v1539, 1.442695
    %v1541 = vpow.pop %v1540
    %v1542 = vadd.f32 %v1541, 1.0
    %v1543 = vrcp.pop %v1542
    %v1544 = vmul.f32 1.0, %v1543
    %v1545 = vmul.f32 %v1537, %v1430
    %v1546 = vmul.f32 %v1531, %v1538
    %v1547 = vadd.f32 %v1545, %v1546
    %v1548 = vtanh.pop %v1547
    %v1549 = vmul.f32 %v1544, %v1548
    %1550 = vst [vmem:[#allocation2 + $0x7] sm:$0x1] %v1549
    %v1551 = vld [vmem:[#allocation2] sm:$0xff]
    %v1552 = vpack.c.bf16 %v1551, %v1551
    %v1553 = vld [vmem:[#allocation10] sm:$0xf]
    %v1554 = vld [vmem:[#allocation10 + $0x4] sm:$0xf]
    %v1555 = vld [vmem:[#allocation10 + $0x8] sm:$0xf]
    %v1556 = vld [vmem:[#allocation10 + $0xc] sm:$0xf]
    %v1557 = vld [vmem:[#allocation10 + $0x10] sm:$0xf]
    %v1558 = vld [vmem:[#allocation10 + $0x14] sm:$0xf]
    %v1559 = vld [vmem:[#allocation10 + $0x18] sm:$0xf]
    %v1560 = vld [vmem:[#allocation10 + $0x1c] sm:$0xf]
    %v1561 = vld [vmem:[#allocation10 + $0x20] sm:$0xf]
    %v1562 = vld [vmem:[#allocation10 + $0x24] sm:$0xf]
    %v1563 = vld [vmem:[#allocation10 + $0x28] sm:$0xf]
    %v1564 = vld [vmem:[#allocation10 + $0x2c] sm:$0xf]
    %v1565 = vld [vmem:[#allocation10 + $0x30] sm:$0xf]
    %v1566 = vld [vmem:[#allocation10 + $0x34] sm:$0xf]
    %v1567 = vld [vmem:[#allocation10 + $0x38] sm:$0xf]
    %v1568 = vld [vmem:[#allocation10 + $0x3c] sm:$0xf]
    %v1569 = vld [vmem:[%s8] sm:$0x1]
    %v1571 = vlaneseq
    %v1572 = vshrl.u32 %v1571, 7
    %v1573 = vsub.s32 0, %v1572
    %v1574 = vrot.slane %v1569, %v1573
    %v1592 = vunpack.c.l.b16 %v1553
    %v1593 = vunpack.c.l.b16 %v1554
    %v1594 = vunpack.c.l.b16 %v1555
    %v1595 = vunpack.c.l.b16 %v1556
    %v1596 = vunpack.c.l.b16 %v1557
    %v1597 = vunpack.c.l.b16 %v1558
    %v1598 = vunpack.c.l.b16 %v1559
    %v1599 = vunpack.c.l.b16 %v1560
    %v1600 = vunpack.c.l.b16 %v1561
    %v1601 = vunpack.c.l.b16 %v1562
    %v1602 = vunpack.c.l.b16 %v1563
    %v1603 = vunpack.c.l.b16 %v1564
    %v1604 = vunpack.c.l.b16 %v1565
    %v1605 = vunpack.c.l.b16 %v1566
    %v1606 = vunpack.c.l.b16 %v1567
    %v1607 = vunpack.c.l.b16 %v1568
    %v1608 = vpack.c.b16 %v1593, %v1592
    %v1609 = vpack.c.b16 %v1595, %v1594
    %v1610 = vpack.c.b16 %v1597, %v1596
    %v1611 = vpack.c.b16 %v1599, %v1598
    %v1612 = vpack.c.b16 %v1601, %v1600
    %v1613 = vpack.c.b16 %v1603, %v1602
    %v1614 = vpack.c.b16 %v1605, %v1604
    %v1615 = vpack.c.b16 %v1607, %v1606
    %1624 = vmatprep.subr.bf16.mxu0 0
    %1625 = vmatpush1.bf16.msra.mxu0 %v1608
    %1626 = vmatprep.subr.bf16.mxu0 0
    %1627 = vmatpush1.bf16.msra.mxu0 %v1609
    %1628 = vmatprep.subr.bf16.mxu0 0
    %1629 = vmatpush1.bf16.msra.mxu0 %v1610
    %1630 = vmatprep.subr.bf16.mxu0 0
    %1631 = vmatpush1.bf16.msra.mxu0 %v1611
    %1632 = vmatprep.subr.bf16.mxu0 0
    %1633 = vmatpush1.bf16.msra.mxu0 %v1612
    %1634 = vmatprep.subr.bf16.mxu0 0
    %1635 = vmatpush1.bf16.msra.mxu0 %v1613
    %1636 = vmatprep.subr.bf16.mxu0 0
    %1637 = vmatpush1.bf16.msra.mxu0 %v1614
    %1638 = vmatprep.subr.bf16.mxu0 0
    %1639 = vmatpush1.bf16.msra.mxu0 %v1615
    %1640 = vmatprep.subr.bf16.mxu0 0
    %1641 = vmatpush1.bf16.msra.mxu0 0
    %1642 = vmatprep.subr.bf16.mxu0 0
    %1643 = vmatpush1.bf16.msra.mxu0 0
    %1644 = vmatprep.subr.bf16.mxu0 0
    %1645 = vmatpush1.bf16.msra.mxu0 0
    %1646 = vmatprep.subr.bf16.mxu0 0
    %1647 = vmatpush1.bf16.msra.mxu0 0
    %1648 = vmatprep.subr.bf16.mxu0 0
    %1649 = vmatpush1.bf16.msra.mxu0 0
    %1650 = vmatprep.subr.bf16.mxu0 0
    %1651 = vmatpush1.bf16.msra.mxu0 0
    %1652 = vmatprep.subr.bf16.mxu0 0
    %1653 = vmatpush1.bf16.msra.mxu0 0
    %1654 = vmatprep.subr.bf16.mxu0 0
    %1655 = vmatpush1.bf16.msra.mxu0 0
    %1656 = vmatprep.mubr.bf16.mxu0 0
    %1657 = vmatmul.mubr.bf16.gmra.mrb[0].mxu0 %v1552
    %v1658 = vpop.f32.mrb[0].mxu0
    %v1659 = vadd.f32 %v1574, %v1658
    %v1660 = vpop.f32.mrb[0].mxu0
    %v1661 = vpop.f32.mrb[0].mxu0
    %v1662 = vpop.f32.mrb[0].mxu0
    %1663 = vdwg.mxu0
    %1664 = vst [vmem:[#allocation13] sm:$0xff] %v1659
    %1665 = vst [vmem:[#allocation14] sm:$0x1] %v1549
    %1666 = vst [vmem:[#allocation16] sm:$0x1] %v1547
    // Predicated region
    $region58: #{tpu_custom_call.1} parent=1 // pred_check
      _
    $region59: #{tpu_custom_call.1} parent=1 // pred_check_branch
      %1668 = sbr.rel (0) target = $region61
    $region60: #{tpu_custom_call.1} parent=1 // pred_region
      %s1670 = ssub.s32 128, 128
      %1671 = vsyncadd [#allocation7], %s1670
      %s1673 = sshll.u32 [#allocation13], 4
      %s1674 = int_to_ptr.vmem [resolvable:$true] %s1673
      %1676 = dma.vmem_to_hbm [thread:$0]  %s1674, 128, %s11, [#allocation7]
    $region61: #{tpu_custom_call.1} parent=1 // pred_fallthru
      _
    // Predicated region
    $region62: #{tpu_custom_call.1} parent=1 // pred_check
      _
    $region63: #{tpu_custom_call.1} parent=1 // pred_check_branch
      %1678 = sbr.rel (0) target = $region65
    $region64: #{tpu_custom_call.1} parent=1 // pred_region
      %s1680 = ssub.s32 16, 16
      %1681 = vsyncadd [#allocation15], %s1680
      %s1683 = sshll.u32 [#allocation14], 4
      %s1684 = int_to_ptr.vmem [resolvable:$true] %s1683
      %1686 = dma.vmem_to_hbm [thread:$0]  %s1684, 16, %s12, [#allocation15]
    $region65: #{tpu_custom_call.1} parent=1 // pred_fallthru
      _
    // Predicated region
    $region66: #{tpu_custom_call.1} parent=1 // pred_check
      _
    $region67: #{tpu_custom_call.1} parent=1 // pred_check_branch
      %1688 = sbr.rel (0) target = $region69
    $region68: #{tpu_custom_call.1} parent=1 // pred_region
      %s1690 = ssub.s32 16, 16
      %1691 = vsyncadd [#allocation15], %s1690
      %s1693 = sshll.u32 [#allocation16], 4
      %s1694 = int_to_ptr.vmem [resolvable:$true] %s1693
      %1696 = dma.vmem_to_hbm [thread:$0]  %s1694, 16, %s13, [#allocation15]
    $region69: #{tpu_custom_call.1} parent=1 // pred_fallthru
      _
    // Predicated region
    $region70: #{tpu_custom_call.1} parent=1 // pred_check
      _
    $region71: #{tpu_custom_call.1} parent=1 // pred_check_branch
      %1698 = sbr.rel (0) target = $region73
    $region72: #{tpu_custom_call.1} parent=1 // pred_region
      %1699 = dma.done [#allocation7], 128
    $region73: #{tpu_custom_call.1} parent=1 // pred_fallthru
      _
    // Predicated region
    $region74: #{tpu_custom_call.1} parent=1 // pred_check
      _
    $region75: #{tpu_custom_call.1} parent=1 // pred_check_branch
      %1701 = sbr.rel (0) target = $region77
    $region76: #{tpu_custom_call.1} parent=1 // pred_region
      %1702 = dma.done [#allocation15], 16
    $region77: #{tpu_custom_call.1} parent=1 // pred_fallthru
      _
    // Predicated region
    $region78: #{tpu_custom_call.1} parent=1 // pred_check
      _
    $region79: #{tpu_custom_call.1} parent=1 // pred_check_branch
      %1704 = sbr.rel (0) target = $region81
    $region80: #{tpu_custom_call.1} parent=1 // pred_region
      %1705 = dma.done [#allocation15], 16
    $region81: #{tpu_custom_call.1} parent=1 // pred_fallthru
      _
    %1706 = vsyncpa [#allocation6], 1
    %1707 = vsyncpa [#allocation9], 1
    %1708 = vsyncpa [#allocation12], 1
    %1709 = vsyncpa [#allocation7], 1
    %1710 = vsyncpa [#allocation15], 1

</llo_original>
